<compile_context>
chip_gen: v7x
topology: tpu7x:2x2x1
jax: 0.10.0
libtpu: 0.0.40
codegen_flags: <defaults>
</compile_context>

<pallas_src>
import math

import jax
import jax.numpy as jnp
from jax.experimental import pallas as pl
from jax.experimental.pallas import tpu as pltpu

NUM_INPUTS = 3
NUM_OUTPUTS = 2          # forced by model_lstm = LSTMCell(32 + 2, 256)
Z_SIZE = 32
HIDDEN = 256

_VMEM = pl.BlockSpec(memory_space=pltpu.MemorySpace.VMEM)
_CP = pltpu.CompilerParams(vmem_limit_bytes=32 * 1024 * 1024)


def _sigmoid(x):
    # exact sigmoid (review: EUP has slack, approx reciprocal only adds drift)
    return 1.0 / (1.0 + jnp.exp(-x))


# ---------------------------------------------------------------------------
# Encoder kernels
# ---------------------------------------------------------------------------
def _conv_relu_kernel(x_ref, w_ref, b_ref, o_ref):
    """One conv as im2col matmul + bias + ReLU (patches built in XLA glue)."""
    y = jnp.dot(x_ref[...], w_ref[...], preferred_element_type=jnp.float32)
    o_ref[...] = jnp.maximum(y + b_ref[...], 0.0)


def conv2d_relu_nhwc(x, w_mat, b, k, stride):
    """x: (B,H,W,C) NHWC.  w_mat: (k*k*C, Cout) pre-folded at init."""
    B, H, W, C = x.shape
    Ho = (H - k) // stride + 1
    Wo = (W - k) // stride + 1
    cols = []
    for di in range(k):
        for dj in range(k):
            cols.append(x[:, di:di + stride * (Ho - 1) + 1:stride,
                          dj:dj + stride * (Wo - 1) + 1:stride, :])
    patches = jnp.concatenate(cols, axis=-1).reshape(B * Ho * Wo, k * k * C)
    Cout = w_mat.shape[1]
    y = pl.pallas_call(
        _conv_relu_kernel,
        out_shape=jax.ShapeDtypeStruct((B * Ho * Wo, Cout), jnp.float32),
        in_specs=[_VMEM, _VMEM, _VMEM],
        out_specs=_VMEM,
        compiler_params=_CP,
    )(patches, w_mat, b)
    return y.reshape(B, Ho, Wo, Cout)


def encoder_ref(p, xh):
    """Known-good 4-call encoder (fallback path)."""
    B = xh.shape[0]
    h = conv2d_relu_nhwc(xh, p["e1_w"], p["e1_b"], 4, 2)         # (B,20,20,32)
    h = conv2d_relu_nhwc(h, p["e2_w"], p["e2_b"], 4, 2)          # (B,9,9,64)
    h = conv2d_relu_nhwc(h, p["e3_w"], p["e3_b"], 3, 2)          # (B,4,4,128)
    h = conv2d_relu_nhwc(h, p["e4_w"], p["e4_b"], 2, 2)          # (B,2,2,256)
    return h.reshape(B, 2 * 2 * 256)


def _encoder_fused_kernel(x_ref, w1_ref, b1_ref, w2_ref, b2_ref, w3_ref, b3_ref,
                          w4_ref, b4_ref, o_ref, s1_ref, s2_ref, s3_ref):
    """All 4 encoder convs in one kernel; activations stay in VMEM scratch."""
    f32 = jnp.float32
    B = x_ref.shape[0]

    def conv(src_ref, Ho, Wo, k, stride, w_ref, b_ref):
        cols = []
        for di in range(k):
            for dj in range(k):
                cols.append(src_ref[:, pl.ds(di, Ho, stride),
                                    pl.ds(dj, Wo, stride), :])
        patches = jnp.concatenate(cols, axis=-1)                 # (B,Ho,Wo,k*k*Cin)
        y = jnp.dot(patches.reshape(B * Ho * Wo, patches.shape[-1]), w_ref[...],
                    preferred_element_type=f32)
        return jnp.maximum(y + b_ref[...], 0.0)

    s1_ref[...] = conv(x_ref, 20, 20, 4, 2, w1_ref, b1_ref).reshape(B, 20, 20, 32)
    s2_ref[...] = conv(s1_ref, 9, 9, 4, 2, w2_ref, b2_ref).reshape(B, 9, 9, 64)
    s3_ref[...] = conv(s2_ref, 4, 4, 3, 2, w3_ref, b3_ref).reshape(B, 4, 4, 128)
    o_ref[...] = conv(s3_ref, 2, 2, 2, 2, w4_ref, b4_ref)        # (B*4, 256)


def encoder_fused(p, xh):
    B = xh.shape[0]
    out = pl.pallas_call(
        _encoder_fused_kernel,
        out_shape=jax.ShapeDtypeStruct((B * 4, 256), jnp.float32),
        in_specs=[_VMEM] * 9,
        out_specs=_VMEM,
        scratch_shapes=[pltpu.VMEM((B, 20, 20, 32), jnp.float32),
                        pltpu.VMEM((B, 9, 9, 64), jnp.float32),
                        pltpu.VMEM((B, 4, 4, 128), jnp.float32)],
        compiler_params=_CP,
    )(xh, p["e1_w"], p["e1_b"], p["e2_w"], p["e2_b"], p["e3_w"], p["e3_b"],
      p["e4_w"], p["e4_b"])
    return out.reshape(B, 2 * 2 * 256)


# ---------------------------------------------------------------------------
# Fused tail kernel: VAE heads + reparam + folded decode_fc.d1 + policy LSTM
# + critic/actor + softmax + multinomial sample + model LSTM.
# ---------------------------------------------------------------------------
def _tail_kernel(flat_ref, eps_ref, u_ref, hpol_ref, cpol_ref, hmod_ref, cmod_ref,
                 wmu_ref, bmu_ref, wlv_ref, blv_ref, wd1_ref, bd1_ref,
                 wpl_ref, bpl_ref, wml_ref, wma_ref, bml_ref,
                 wc_ref, bc_ref, wact_ref, bact_ref,
                 mu_o, lv_o, z_o, d1_o, hp_o, cp_o, v_o, prob_o, act_o, hm_o, cm_o):
    f32 = jnp.float32
    x = flat_ref[...]

    # --- VAE heads + reparameterization ---
    mu = jnp.dot(x, wmu_ref[...], preferred_element_type=f32) + bmu_ref[...]
    lv = jnp.dot(x, wlv_ref[...], preferred_element_type=f32) + blv_ref[...]
    z = mu + eps_ref[...] * jnp.exp(0.5 * lv)
    mu_o[...] = mu
    lv_o[...] = lv
    z_o[...] = z

    # --- decode_fc folded into first ConvTranspose (1x1 spatial == matmul) ---
    d1_o[...] = jnp.dot(z, wd1_ref[...], preferred_element_type=f32) + bd1_ref[...]

    h_mod = hmod_ref[...]
    h_pol = hpol_ref[...]

    # --- policy LSTM on cat(z, h_model): one merged matmul [h_mod|h_pol|z] ---
    xp = jnp.concatenate([h_mod, h_pol, z], axis=-1)
    g = jnp.dot(xp, wpl_ref[...], preferred_element_type=f32) + bpl_ref[...]
    i_g = _sigmoid(g[:, 0 * HIDDEN:1 * HIDDEN])
    f_g = _sigmoid(g[:, 1 * HIDDEN:2 * HIDDEN])
    g_g = jnp.tanh(g[:, 2 * HIDDEN:3 * HIDDEN])
    o_g = _sigmoid(g[:, 3 * HIDDEN:4 * HIDDEN])
    c_p = f_g * cpol_ref[...] + i_g * g_g
    h_p = o_g * jnp.tanh(c_p)
    hp_o[...] = h_p
    cp_o[...] = c_p

    # --- critic / actor heads + softmax ---
    v_o[...] = jnp.dot(h_p, wc_ref[...], preferred_element_type=f32) + bc_ref[...]
    logit = jnp.dot(h_p, wact_ref[...], preferred_element_type=f32) + bact_ref[...]
    m = jnp.max(logit, axis=-1, keepdims=True)
    e = jnp.exp(logit - m)
    prob = e / jnp.sum(e, axis=-1, keepdims=True)
    prob_o[...] = prob

    # --- multinomial sample via inverse CDF on a uniform (== torch.multinomial)
    B, N = prob.shape
    uv = u_ref[...]
    lane = jax.lax.broadcasted_iota(jnp.int32, (B, N), 1)
    action = jnp.zeros_like(uv)
    for j in range(N - 1):                                       # unrolled, static N
        cum_j = jnp.sum(jnp.where(lane <= j, prob, 0.0), axis=-1, keepdims=True)
        action = action + jnp.where(uv >= cum_j, 1.0, 0.0)
    act_o[...] = action

    # --- model LSTM on cat(z, onehot): merged [h_mod|z] matmul + row select ---
    xm = jnp.concatenate([h_mod, z], axis=-1)
    g2 = jnp.dot(xm, wml_ref[...], preferred_element_type=f32) + bml_ref[...]
    wma = wma_ref[...]
    for j in range(N):                                           # onehot @ W == row select
        g2 = g2 + jnp.where(action == jnp.float32(j), 1.0, 0.0) * wma[j:j + 1, :]
    i2 = _sigmoid(g2[:, 0 * HIDDEN:1 * HIDDEN])
    f2 = _sigmoid(g2[:, 1 * HIDDEN:2 * HIDDEN])
    gg2 = jnp.tanh(g2[:, 2 * HIDDEN:3 * HIDDEN])
    o2 = _sigmoid(g2[:, 3 * HIDDEN:4 * HIDDEN])
    c_m = f2 * cmod_ref[...] + i2 * gg2
    h_m = o2 * jnp.tanh(c_m)
    hm_o[...] = h_m
    cm_o[...] = c_m


def fused_tail(flat, eps, u, state, p):
    B = flat.shape[0]
    out_shape = (
        jax.ShapeDtypeStruct((B, Z_SIZE), jnp.float32),        # mu
        jax.ShapeDtypeStruct((B, Z_SIZE), jnp.float32),        # logvar
        jax.ShapeDtypeStruct((B, Z_SIZE), jnp.float32),        # z
        jax.ShapeDtypeStruct((B, 4 * 4 * 128), jnp.float32),   # d1 taps (pre-bias)
        jax.ShapeDtypeStruct((B, HIDDEN), jnp.float32),        # h_policy'
        jax.ShapeDtypeStruct((B, HIDDEN), jnp.float32),        # c_policy'
        jax.ShapeDtypeStruct((B, 1), jnp.float32),             # v
        jax.ShapeDtypeStruct((B, NUM_OUTPUTS), jnp.float32),   # prob
        jax.ShapeDtypeStruct((B, 1), jnp.float32),             # action (float)
        jax.ShapeDtypeStruct((B, HIDDEN), jnp.float32),        # h_model'
        jax.ShapeDtypeStruct((B, HIDDEN), jnp.float32),        # c_model'
    )
    args = (flat, eps, u,
            state["h_policy"], state["c_policy"], state["h_model"], state["c_model"],
            p["mu_w"], p["mu_b"], p["lv_w"], p["lv_b"], p["d1f_w"], p["d1f_b"],
            p["plstm_w"], p["plstm_b"], p["mlstm_w"], p["mlstm_wa"], p["mlstm_b"],
            p["critic_w"], p["critic_b"], p["actor_w"], p["actor_b"])
    return pl.pallas_call(
        _tail_kernel,
        out_shape=out_shape,
        in_specs=[_VMEM] * len(args),
        out_specs=(_VMEM,) * len(out_shape),
        # LSTM states are updated in place (h_policy->h_policy', ...)
        input_output_aliases={3: 4, 4: 5, 5: 9, 6: 10},
        compiler_params=_CP,
    )(*args)


# ---------------------------------------------------------------------------
# Decoder (ConvTranspose stack).  Fused single-kernel path + safe fallback.
# ---------------------------------------------------------------------------
def _relu_bias_mm_kernel(x_ref, b_ref, w_ref, o_ref):
    xv = jnp.maximum(x_ref[...] + b_ref[...], 0.0)
    o_ref[...] = jnp.dot(xv, w_ref[...], preferred_element_type=jnp.float32)


def relu_bias_matmul(x, b_in, w_mat):
    M = x.shape[0]
    N = w_mat.shape[1]
    return pl.pallas_call(
        _relu_bias_mm_kernel,
        out_shape=jax.ShapeDtypeStruct((M, N), jnp.float32),
        in_specs=[_VMEM, _VMEM, _VMEM],
        out_specs=_VMEM,
        compiler_params=_CP,
    )(x, b_in, w_mat)


def _bias_sigmoid_kernel(x_ref, b_ref, o_ref):
    o_ref[...] = _sigmoid(x_ref[...] + b_ref[...])


def bias_sigmoid(x, b):
    return pl.pallas_call(
        _bias_sigmoid_kernel,
        out_shape=jax.ShapeDtypeStruct(x.shape, jnp.float32),
        in_specs=[_VMEM, _VMEM],
        out_specs=_VMEM,
        compiler_params=_CP,
    )(x, b)


def scatter_convt_taps(y, B, Hin, Win, k, Cout, stride):
    """XLA fallback: (B*Hin*Win, k*k*Cout) taps -> (B, Hout, Wout, Cout) pre-bias."""
    Hout = (Hin - 1) * stride + k
    Wout = (Win - 1) * stride + k
    y = y.reshape(B, Hin, Win, k, k, Cout)
    out = jnp.zeros((B, Hout, Wout, Cout), jnp.float32)
    for kh in range(k):
        for kw in range(k):
            tap = y[:, :, :, kh, kw, :]
            cfg = ((0, 0, 0),
                   (kh, k - 1 - kh, stride - 1),
                   (kw, k - 1 - kw, stride - 1),
                   (0, 0, 0))
            out = out + jax.lax.pad(tap, jnp.float32(0.0), cfg)
    return out


def decoder_ref(p, d1_mat):
    """Known-good multi-call decoder (fallback path).  d1_mat: (B*16, 128)."""
    B = d1_mat.shape[0] // 16
    y = relu_bias_matmul(d1_mat, p["d1_b"], p["d2_w"])           # (B*16, 576)
    r = scatter_convt_taps(y, B, 4, 4, 3, 64, 2)                 # (B,9,9,64)
    y = relu_bias_matmul(r.reshape(B * 81, 64), p["d2_b"], p["d3_w"])
    r = scatter_convt_taps(y, B, 9, 9, 4, 32, 2)                 # (B,20,20,32)
    y = relu_bias_matmul(r.reshape(B * 400, 32), p["d3_b"], p["d4_w"])
    r = scatter_convt_taps(y, B, 20, 20, 4, 3, 2)                # (B,42,42,3)
    xf = bias_sigmoid(r.reshape(B, 42 * 42 * 3), p["d4_bt"])
    return xf.reshape(B, 42, 42, 3)


def _decoder_fused_kernel(x_ref, b1_ref, w2_ref, b2_ref, w3_ref, b3_ref,
                          w4_ref, b4_ref, o_ref, s2_ref, s3_ref, s4_ref):
    """d2/d3/d4 tap matmuls + stride-2 scatter-adds + sigmoid in one kernel."""
    f32 = jnp.float32
    B = s2_ref.shape[0]

    def scatter_add(dst_ref, y, hin, win, k, cout):
        for kh in range(k):
            for kw in range(k):
                t = kh * k + kw
                tap = y[:, t * cout:(t + 1) * cout].reshape(B, hin, win, cout)
                dst_ref[:, pl.ds(kh, hin, 2), pl.ds(kw, win, 2), :] += tap

    a1 = jnp.maximum(x_ref[...] + b1_ref[...], 0.0)                  # (B*16, 128)
    y2 = jnp.dot(a1, w2_ref[...], preferred_element_type=f32)        # (B*16, 576)
    s2_ref[...] = jnp.zeros_like(s2_ref)
    scatter_add(s2_ref, y2, 4, 4, 3, 64)                             # (B,9,9,64)

    a2 = jnp.maximum(s2_ref[...].reshape(B * 81, 64) + b2_ref[...], 0.0)
    y3 = jnp.dot(a2, w3_ref[...], preferred_element_type=f32)        # (B*81, 512)
    s3_ref[...] = jnp.zeros_like(s3_ref)
    scatter_add(s3_ref, y3, 9, 9, 4, 32)                             # (B,20,20,32)

    a3 = jnp.maximum(s3_ref[...].reshape(B * 400, 32) + b3_ref[...], 0.0)
    y4 = jnp.dot(a3, w4_ref[...], preferred_element_type=f32)        # (B*400, 48)
    s4_ref[...] = jnp.zeros_like(s4_ref)
    scatter_add(s4_ref, y4, 20, 20, 4, 3)                            # (B,42,42,3)

    o_ref[...] = _sigmoid(s4_ref[...] + b4_ref[...])


def decoder_fused(p, d1_mat):
    B = d1_mat.shape[0] // 16
    return pl.pallas_call(
        _decoder_fused_kernel,
        out_shape=jax.ShapeDtypeStruct((B, 42, 42, 3), jnp.float32),
        in_specs=[_VMEM] * 8,
        out_specs=_VMEM,
        scratch_shapes=[pltpu.VMEM((B, 9, 9, 64), jnp.float32),
                        pltpu.VMEM((B, 20, 20, 32), jnp.float32),
                        pltpu.VMEM((B, 42, 42, 3), jnp.float32)],
        compiler_params=_CP,
    )(d1_mat, p["d1_b"], p["d2_w"], p["d2_b"], p["d3_w"], p["d3_b"],
      p["d4_w"], p["d4_b"])


# ---------------------------------------------------------------------------
# Parameters: PyTorch-style uniform init; all layout folds at init time
# (im2col / tap weight matrices, NHWC-flatten permutation in the heads,
# LSTM concat folds, decode_fc x d1 fold).
# ---------------------------------------------------------------------------
def init_params(key, num_inputs, num_outputs):
    keys = iter(jax.random.split(key, 64))
    p = {}

    def u(shape, fan_in):
        bound = 1.0 / math.sqrt(fan_in)
        return jax.random.uniform(next(keys), shape, jnp.float32, -bound, bound)

    def conv(name, cout, cin, k):
        fan = cin * k * k
        w = u((cout, cin, k, k), fan)                                 # torch layout
        p[name + "_w"] = w.transpose(2, 3, 1, 0).reshape(k * k * cin, cout)
        p[name + "_b"] = u((1, cout), fan)

    def convt(name, cin, cout, k):
        fan = cout * k * k                                            # torch fan_in rule
        w = u((cin, cout, k, k), fan)                                 # torch layout
        p[name + "_w"] = w.transpose(0, 2, 3, 1).reshape(cin, k * k * cout)
        p[name + "_b"] = u((1, cout), fan)

    def linear(name, fin, fout):
        p[name + "_w"] = u((fin, fout), fin)                          # stored transposed
        p[name + "_b"] = u((1, fout), fin)

    def head_linear(name):
        # Linear(256*2*2 -> Z) with the NCHW-flatten -> NHWC-flatten fold
        fan = 256 * 2 * 2
        w = u((Z_SIZE, 256, 2, 2), fan)                               # torch (Z, C, H, W)
        p[name + "_w"] = w.transpose(2, 3, 1, 0).reshape(2 * 2 * 256, Z_SIZE)
        p[name + "_b"] = u((1, Z_SIZE), fan)

    def lstm(in_size, hid):
        wih = u((in_size, 4 * hid), hid)
        whh = u((hid, 4 * hid), hid)
        b = u((1, 4 * hid), hid) + u((1, 4 * hid), hid)               # b_ih + b_hh
        return wih, whh, b

    conv("e1", 32, num_inputs, 4)
    conv("e2", 64, 32, 4)
    conv("e3", 128, 64, 3)
    conv("e4", 256, 128, 2)
    head_linear("mu")
    head_linear("lv")
    linear("dfc", Z_SIZE, 1024)
    convt("d1", 1024, 128, 4)
    convt("d2", 128, 64, 3)
    convt("d3", 64, 32, 4)
    convt("d4", 32, 3, 4)

    # policy LSTM on cat(z, h_model): merged weight, row order [h_model|h_policy|z]
    wih, whh, b = lstm(Z_SIZE + HIDDEN, HIDDEN)
    p["plstm_w"] = jnp.concatenate([wih[Z_SIZE:], whh, wih[:Z_SIZE]], axis=0)
    p["plstm_b"] = b

    # model LSTM on cat(z, onehot): merged [h_model|z] weight + action rows
    wih, whh, b = lstm(Z_SIZE + num_outputs, HIDDEN)
    p["mlstm_w"] = jnp.concatenate([whh, wih[:Z_SIZE]], axis=0)
    p["mlstm_wa"] = wih[Z_SIZE:]
    p["mlstm_b"] = b

    linear("critic", HIDDEN, 1)
    linear("actor", HIDDEN, num_outputs)

    # decode_fc (no activation in the reference) folded into the first
    # ConvTranspose: removes the 8 MB d1 weight from the per-step path.
    p["d1f_w"] = jnp.dot(p["dfc_w"], p["d1_w"])                       # (32, 2048)
    p["d1f_b"] = jnp.dot(p["dfc_b"], p["d1_w"])                       # (1, 2048)
    del p["d1_w"], p["dfc_w"], p["dfc_b"]

    # lane-dense tiled bias for the fallback decoder's final sigmoid
    p["d4_bt"] = jnp.tile(p["d4_b"], (1, 42 * 42))
    return p


# ---------------------------------------------------------------------------
# Full forward pass
# ---------------------------------------------------------------------------
def model_forward(params, state, x, key, fuse_encoder=True, fuse_decoder=True):
    p = params
    B = x.shape[0]
    xh = jnp.transpose(x, (0, 2, 3, 1))                          # NCHW -> NHWC once

    flat = encoder_fused(p, xh) if fuse_encoder else encoder_ref(p, xh)

    k_eps, k_u = jax.random.split(key)
    eps = jax.random.normal(k_eps, (B, Z_SIZE), jnp.float32)
    uni = jax.random.uniform(k_u, (B, 1), jnp.float32)

    (mu, logvar, z, d1_taps, h_pol, c_pol, v, prob, action_f,
     h_mod, c_mod) = fused_tail(flat, eps, uni, state, p)

    # d1 has 1x1 input spatial -> taps == 4x4 output, no overlap: pure reshape
    d1_mat = d1_taps.reshape(B * 16, 128)
    xh_hat = decoder_fused(p, d1_mat) if fuse_decoder else decoder_ref(p, d1_mat)
    x_hat = jnp.transpose(xh_hat, (0, 3, 1, 2))                  # back to NCHW

    action = action_f.astype(jnp.int32)
    new_state = dict(h_policy=h_pol, c_policy=c_pol, h_model=h_mod, c_model=c_mod)
    return (z, x_hat, mu, logvar, v, prob, action), new_state


if __name__ == "__main__":
    key = jax.random.PRNGKey(0)
    k_param, k_in, k_probe, k_fwd = jax.random.split(key, 4)

    params = init_params(k_param, NUM_INPUTS, NUM_OUTPUTS)
    # LSTM hidden states start at zero (batch fixed to 1, as in the module)
    state = dict(h_policy=jnp.zeros((1, HIDDEN), jnp.float32),
                 c_policy=jnp.zeros((1, HIDDEN), jnp.float32),
                 h_model=jnp.zeros((1, HIDDEN), jnp.float32),
                 c_model=jnp.zeros((1, HIDDEN), jnp.float32))

    # 42x42 input is what the encoder geometry requires to reach 256*2*2 feats.
    x = jax.random.normal(k_in, (1, NUM_INPUTS, 42, 42), jnp.float32)

    # Select the fused single-kernel encoder/decoder only if they compile AND
    # numerically agree with the conservative multi-call reference path.
    def _try_match(fused_fn, ref_out, *args):
        try:
            out = jax.block_until_ready(jax.jit(fused_fn)(*args))
            return bool(jnp.allclose(out, ref_out, rtol=1e-4, atol=1e-4))
        except Exception:
            return False

    xh = jnp.transpose(x, (0, 2, 3, 1))
    enc_ref_out = jax.block_until_ready(jax.jit(encoder_ref)(params, xh))
    use_fused_enc = _try_match(encoder_fused, enc_ref_out, params, xh)

    d1_probe = jax.random.normal(k_probe, (16, 128), jnp.float32)
    dec_ref_out = jax.block_until_ready(jax.jit(decoder_ref)(params, d1_probe))
    use_fused_dec = _try_match(decoder_fused, dec_ref_out, params, d1_probe)

    fwd = jax.jit(lambda p_, s_, x_, k_: model_forward(
        p_, s_, x_, k_, fuse_encoder=use_fused_enc, fuse_decoder=use_fused_dec))

    outs, new_state = fwd(params, state, x, k_fwd)
    outs = jax.block_until_ready(outs)
    jax.block_until_ready(new_state)

    z, x_hat, mu, logvar, v, prob, action = outs
    assert z.shape == (1, Z_SIZE)
    assert x_hat.shape == (1, 3, 42, 42)
    assert mu.shape == (1, Z_SIZE) and logvar.shape == (1, Z_SIZE)
    assert v.shape == (1, 1)
    assert prob.shape == (1, NUM_OUTPUTS)
    assert action.shape == (1, 1)
    assert bool(jnp.all(jnp.isfinite(x_hat)))
    assert abs(float(jnp.sum(prob)) - 1.0) < 1e-4
    assert int(action[0, 0]) in (0, 1)
    assert new_state["h_policy"].shape == (1, HIDDEN)

    print("KERNEL_OK")
</pallas_src>

<mosaic_0001>
module attributes {stable_mosaic.version = 11 : i64} {
  func.func @_conv_relu_kernel(%arg0: memref<400x48xf32, #tpu.memory_space<vmem>>, %arg1: memref<48x32xf32, #tpu.memory_space<vmem>>, %arg2: memref<1x32xf32, #tpu.memory_space<vmem>>, %arg3: memref<400x32xf32, #tpu.memory_space<vmem>>) attributes {dimension_semantics = [], scalar_prefetch = 0 : i64, scratch_operands = 0 : i64, tpu.core_type = #tpu.core_type<tc>} {
    %c0 = arith.constant 0 : index
    %c0_0 = arith.constant 0 : index
    %0 = vector.load %arg0[%c0, %c0_0] : memref<400x48xf32, #tpu.memory_space<vmem>>, vector<400x48xf32>
    %c0_1 = arith.constant 0 : index
    %c0_2 = arith.constant 0 : index
    %1 = vector.load %arg1[%c0_1, %c0_2] : memref<48x32xf32, #tpu.memory_space<vmem>>, vector<48x32xf32>
    %cst = arith.constant dense<0.000000e+00> : vector<400x32xf32>
    %2 = tpu.matmul %0, %1, %cst {dimension_numbers = #tpu.dot_dimension_numbers<[1], [0], [0], [1], [0, 0, 1, 1], [], []>} : vector<400x48xf32>, vector<48x32xf32>, vector<400x32xf32> -> vector<400x32xf32>
    %c0_3 = arith.constant 0 : index
    %c0_4 = arith.constant 0 : index
    %3 = vector.load %arg2[%c0_3, %c0_4] : memref<1x32xf32, #tpu.memory_space<vmem>>, vector<1x32xf32>
    %4 = vector.broadcast %3 : vector<1x32xf32> to vector<400x32xf32>
    %5 = arith.addf %2, %4 : vector<400x32xf32>
    %cst_5 = arith.constant 0.000000e+00 : f32
    %6 = vector.broadcast %cst_5 : f32 to vector<400x32xf32>
    %7 = arith.maximumf %5, %6 : vector<400x32xf32>
    %c0_6 = arith.constant 0 : index
    %c0_7 = arith.constant 0 : index
    %8 = vector.load %arg3[%c0_6, %c0_7] : memref<400x32xf32, #tpu.memory_space<vmem>>, vector<400x32xf32>
    tpu.vector_store %arg3[%c0_6, %c0_7], %7 {strides = array<i32>} : memref<400x32xf32, #tpu.memory_space<vmem>>, vector<400x32xf32>,
    return
  }
}

module attributes {stable_mosaic.version = 11 : i64} {
  func.func @_conv_relu_kernel(%arg0: memref<81x512xf32, #tpu.memory_space<vmem>>, %arg1: memref<512x64xf32, #tpu.memory_space<vmem>>, %arg2: memref<1x64xf32, #tpu.memory_space<vmem>>, %arg3: memref<81x64xf32, #tpu.memory_space<vmem>>) attributes {dimension_semantics = [], scalar_prefetch = 0 : i64, scratch_operands = 0 : i64, tpu.core_type = #tpu.core_type<tc>} {
    %c0 = arith.constant 0 : index
    %c0_0 = arith.constant 0 : index
    %0 = vector.load %arg0[%c0, %c0_0] : memref<81x512xf32, #tpu.memory_space<vmem>>, vector<81x512xf32>
    %c0_1 = arith.constant 0 : index
    %c0_2 = arith.constant 0 : index
    %1 = vector.load %arg1[%c0_1, %c0_2] : memref<512x64xf32, #tpu.memory_space<vmem>>, vector<512x64xf32>
    %cst = arith.constant dense<0.000000e+00> : vector<81x64xf32>
    %2 = tpu.matmul %0, %1, %cst {dimension_numbers = #tpu.dot_dimension_numbers<[1], [0], [0], [1], [0, 0, 1, 1], [], []>} : vector<81x512xf32>, vector<512x64xf32>, vector<81x64xf32> -> vector<81x64xf32>
    %c0_3 = arith.constant 0 : index
    %c0_4 = arith.constant 0 : index
    %3 = vector.load %arg2[%c0_3, %c0_4] : memref<1x64xf32, #tpu.memory_space<vmem>>, vector<1x64xf32>
    %4 = vector.broadcast %3 : vector<1x64xf32> to vector<81x64xf32>
    %5 = arith.addf %2, %4 : vector<81x64xf32>
    %cst_5 = arith.constant 0.000000e+00 : f32
    %6 = vector.broadcast %cst_5 : f32 to vector<81x64xf32>
    %7 = arith.maximumf %5, %6 : vector<81x64xf32>
    %c0_6 = arith.constant 0 : index
    %c0_7 = arith.constant 0 : index
    %8 = vector.load %arg3[%c0_6, %c0_7] : memref<81x64xf32, #tpu.memory_space<vmem>>, vector<81x64xf32>
    tpu.vector_store %arg3[%c0_6, %c0_7], %7 {strides = array<i32>} : memref<81x64xf32, #tpu.memory_space<vmem>>, vector<81x64xf32>,
    return
  }
}

module attributes {stable_mosaic.version = 11 : i64} {
  func.func @_conv_relu_kernel(%arg0: memref<16x576xf32, #tpu.memory_space<vmem>>, %arg1: memref<576x128xf32, #tpu.memory_space<vmem>>, %arg2: memref<1x128xf32, #tpu.memory_space<vmem>>, %arg3: memref<16x128xf32, #tpu.memory_space<vmem>>) attributes {dimension_semantics = [], scalar_prefetch = 0 : i64, scratch_operands = 0 : i64, tpu.core_type = #tpu.core_type<tc>} {
    %c0 = arith.constant 0 : index
    %c0_0 = arith.constant 0 : index
    %0 = vector.load %arg0[%c0, %c0_0] : memref<16x576xf32, #tpu.memory_space<vmem>>, vector<16x576xf32>
    %c0_1 = arith.constant 0 : index
    %c0_2 = arith.constant 0 : index
    %1 = vector.load %arg1[%c0_1, %c0_2] : memref<576x128xf32, #tpu.memory_space<vmem>>, vector<576x128xf32>
    %cst = arith.constant dense<0.000000e+00> : vector<16x128xf32>
    %2 = tpu.matmul %0, %1, %cst {dimension_numbers = #tpu.dot_dimension_numbers<[1], [0], [0], [1], [0, 0, 1, 1], [], []>} : vector<16x576xf32>, vector<576x128xf32>, vector<16x128xf32> -> vector<16x128xf32>
    %c0_3 = arith.constant 0 : index
    %c0_4 = arith.constant 0 : index
    %3 = vector.load %arg2[%c0_3, %c0_4] : memref<1x128xf32, #tpu.memory_space<vmem>>, vector<1x128xf32>
    %4 = vector.broadcast %3 : vector<1x128xf32> to vector<16x128xf32>
    %5 = arith.addf %2, %4 : vector<16x128xf32>
    %cst_5 = arith.constant 0.000000e+00 : f32
    %6 = vector.broadcast %cst_5 : f32 to vector<16x128xf32>
    %7 = arith.maximumf %5, %6 : vector<16x128xf32>
    %c0_6 = arith.constant 0 : index
    %c0_7 = arith.constant 0 : index
    %8 = vector.load %arg3[%c0_6, %c0_7] : memref<16x128xf32, #tpu.memory_space<vmem>>, vector<16x128xf32>
    tpu.vector_store %arg3[%c0_6, %c0_7], %7 {strides = array<i32>} : memref<16x128xf32, #tpu.memory_space<vmem>>, vector<16x128xf32>,
    return
  }
}

module attributes {stable_mosaic.version = 11 : i64} {
  func.func @_conv_relu_kernel(%arg0: memref<4x512xf32, #tpu.memory_space<vmem>>, %arg1: memref<512x256xf32, #tpu.memory_space<vmem>>, %arg2: memref<1x256xf32, #tpu.memory_space<vmem>>, %arg3: memref<4x256xf32, #tpu.memory_space<vmem>>) attributes {dimension_semantics = [], scalar_prefetch = 0 : i64, scratch_operands = 0 : i64, tpu.core_type = #tpu.core_type<tc>} {
    %c0 = arith.constant 0 : index
    %c0_0 = arith.constant 0 : index
    %0 = vector.load %arg0[%c0, %c0_0] : memref<4x512xf32, #tpu.memory_space<vmem>>, vector<4x512xf32>
    %c0_1 = arith.constant 0 : index
    %c0_2 = arith.constant 0 : index
    %1 = vector.load %arg1[%c0_1, %c0_2] : memref<512x256xf32, #tpu.memory_space<vmem>>, vector<512x256xf32>
    %cst = arith.constant dense<0.000000e+00> : vector<4x256xf32>
    %2 = tpu.matmul %0, %1, %cst {dimension_numbers = #tpu.dot_dimension_numbers<[1], [0], [0], [1], [0, 0, 1, 1], [], []>} : vector<4x512xf32>, vector<512x256xf32>, vector<4x256xf32> -> vector<4x256xf32>
    %c0_3 = arith.constant 0 : index
    %c0_4 = arith.constant 0 : index
    %3 = vector.load %arg2[%c0_3, %c0_4] : memref<1x256xf32, #tpu.memory_space<vmem>>, vector<1x256xf32>
    %4 = vector.broadcast %3 : vector<1x256xf32> to vector<4x256xf32>
    %5 = arith.addf %2, %4 : vector<4x256xf32>
    %cst_5 = arith.constant 0.000000e+00 : f32
    %6 = vector.broadcast %cst_5 : f32 to vector<4x256xf32>
    %7 = arith.maximumf %5, %6 : vector<4x256xf32>
    %c0_6 = arith.constant 0 : index
    %c0_7 = arith.constant 0 : index
    %8 = vector.load %arg3[%c0_6, %c0_7] : memref<4x256xf32, #tpu.memory_space<vmem>>, vector<4x256xf32>
    tpu.vector_store %arg3[%c0_6, %c0_7], %7 {strides = array<i32>} : memref<4x256xf32, #tpu.memory_space<vmem>>, vector<4x256xf32>,
    return
  }
}

</mosaic_0001>

<llo_original>
// kernel: encoder_ref.4
$region0: #{encoder_ref.4}
  #allocation0 [shape = 'u32[]', space=smem, size = 0x4, offset = 0x4, fixed_abs, tag = 'smem constant byte address 0x4 - core index']
  #allocation1 [shape = 'u32[144,128]{1,0:T(1,128)}', space=vmem, size = 0x12000, scoped, tag = 'internal scratch']
  %s0 = inlined_call_operand.vmem [shape: f32[400,48], index: 0, kind: input, shape index: {}]
  %s1 = inlined_call_operand.vmem [shape: f32[48,32], index: 1, kind: input, shape index: {}]
  %s2 = inlined_call_operand.vmem [shape: f32[1,32], index: 2, kind: input, shape index: {}]
  %s3 = inlined_call_operand.vmem [shape: f32[400,32], index: 3, kind: output, shape index: {}]
  %s4 = sld [smem:[#allocation0]]
  $region22: #{encoder_ref.4} parent=0
    _
  %s6 = ssub.s32 1, %s4
  %s7 = scalar_select 0, %s6, %s4
  // Predicated region
  $region2: #{encoder_ref.4} parent=0 // pred_check
    _
  $region3: #{encoder_ref.4} parent=0 // pred_check_branch
    %9 = sbr.rel (0) target = $region5
  $region4: #{encoder_ref.4} parent=0 // pred_region
    _
  $region5: #{encoder_ref.4} parent=0 // pred_fallthru
    _
  // Predicated region
  $region6: #{encoder_ref.4} parent=0 // pred_check
    _
  $region7: #{encoder_ref.4} parent=0 // pred_check_branch
    %11 = sbr.rel (0) target = $region9
  $region8: #{encoder_ref.4} parent=0 // pred_region
    _
  $region9: #{encoder_ref.4} parent=0 // pred_fallthru
    _
  // Predicated region
  $region10: #{encoder_ref.4} parent=0 // pred_check
    _
  $region11: #{encoder_ref.4} parent=0 // pred_check_branch
    %13 = sbr.rel (0) target = $region13
  $region12: #{encoder_ref.4} parent=0 // pred_region
    _
  $region13: #{encoder_ref.4} parent=0 // pred_fallthru
    _
  %v14 = vld [vmem:[%s0] sm:$0xff]
  %v15 = vld [vmem:[%s0 + $0x8] sm:$0xff]
  %v16 = vld [vmem:[%s0 + $0x10] sm:$0xff]
  %v17 = vld [vmem:[%s0 + $0x18] sm:$0xff]
  %v18 = vld [vmem:[%s0 + $0x20] sm:$0xff]
  %v19 = vld [vmem:[%s0 + $0x28] sm:$0xff]
  %v20 = vld [vmem:[%s0 + $0x30] sm:$0xff]
  %v21 = vld [vmem:[%s0 + $0x38] sm:$0xff]
  %v22 = vld [vmem:[%s0 + $0x40] sm:$0xff]
  %v23 = vld [vmem:[%s0 + $0x48] sm:$0xff]
  %v24 = vld [vmem:[%s0 + $0x50] sm:$0xff]
  %v25 = vld [vmem:[%s0 + $0x58] sm:$0xff]
  %v26 = vld [vmem:[%s0 + $0x60] sm:$0xff]
  %v27 = vld [vmem:[%s0 + $0x68] sm:$0xff]
  %v28 = vld [vmem:[%s0 + $0x70] sm:$0xff]
  %v29 = vld [vmem:[%s0 + $0x78] sm:$0xff]
  %v30 = vld [vmem:[%s0 + $0x80] sm:$0xff]
  %v31 = vld [vmem:[%s0 + $0x88] sm:$0xff]
  %v32 = vld [vmem:[%s0 + $0x90] sm:$0xff]
  %v33 = vld [vmem:[%s0 + $0x98] sm:$0xff]
  %v34 = vld [vmem:[%s0 + $0xa0] sm:$0xff]
  %v35 = vld [vmem:[%s0 + $0xa8] sm:$0xff]
  %v36 = vld [vmem:[%s0 + $0xb0] sm:$0xff]
  %v37 = vld [vmem:[%s0 + $0xb8] sm:$0xff]
  %v38 = vld [vmem:[%s0 + $0xc0] sm:$0xff]
  %v39 = vld [vmem:[%s0 + $0xc8] sm:$0xff]
  %v40 = vld [vmem:[%s0 + $0xd0] sm:$0xff]
  %v41 = vld [vmem:[%s0 + $0xd8] sm:$0xff]
  %v42 = vld [vmem:[%s0 + $0xe0] sm:$0xff]
  %v43 = vld [vmem:[%s0 + $0xe8] sm:$0xff]
  %v44 = vld [vmem:[%s0 + $0xf0] sm:$0xff]
  %v45 = vld [vmem:[%s0 + $0xf8] sm:$0xff]
  %v46 = vld [vmem:[%s0 + $0x100] sm:$0xff]
  %v47 = vld [vmem:[%s0 + $0x108] sm:$0xff]
  %v48 = vld [vmem:[%s0 + $0x110] sm:$0xff]
  %v49 = vld [vmem:[%s0 + $0x118] sm:$0xff]
  %v50 = vld [vmem:[%s0 + $0x120] sm:$0xff]
  %v51 = vld [vmem:[%s0 + $0x128] sm:$0xff]
  %v52 = vld [vmem:[%s0 + $0x130] sm:$0xff]
  %v53 = vld [vmem:[%s0 + $0x138] sm:$0xff]
  %v54 = vld [vmem:[%s0 + $0x140] sm:$0xff]
  %v55 = vld [vmem:[%s0 + $0x148] sm:$0xff]
  %v56 = vld [vmem:[%s0 + $0x150] sm:$0xff]
  %v57 = vld [vmem:[%s0 + $0x158] sm:$0xff]
  %v58 = vld [vmem:[%s0 + $0x160] sm:$0xff]
  %v59 = vld [vmem:[%s0 + $0x168] sm:$0xff]
  %v60 = vld [vmem:[%s0 + $0x170] sm:$0xff]
  %v61 = vld [vmem:[%s0 + $0x178] sm:$0xff]
  %v62 = vld [vmem:[%s0 + $0x180] sm:$0xff]
  %v63 = vld [vmem:[%s0 + $0x188] sm:$0xff]
  %v64 = vld [vmem:[%s1] sm:$0xff]
  %v65 = vld [vmem:[%s1 + $0x8] sm:$0xff]
  %v66 = vld [vmem:[%s1 + $0x10] sm:$0xff]
  %v67 = vld [vmem:[%s1 + $0x18] sm:$0xff]
  %v68 = vld [vmem:[%s1 + $0x20] sm:$0xff]
  %v69 = vld [vmem:[%s1 + $0x28] sm:$0xff]
  %v70 = vld [vmem:[%s2] sm:$0x1]
  %v72 = vlaneseq
  %v73 = vshrl.u32 %v72, 7
  %v74 = vsub.s32 0, %v73
  %v75 = vrot.slane %v70, %v74
  %vm77 = vcmask 392192
  %v79 = vsel %vm77, %v14, 0
  %v82 = vsel %vm77, %v15, 0
  %v85 = vsel %vm77, %v16, 0
  %v88 = vsel %vm77, %v17, 0
  %v91 = vsel %vm77, %v18, 0
  %v94 = vsel %vm77, %v19, 0
  %v97 = vsel %vm77, %v20, 0
  %v100 = vsel %vm77, %v21, 0
  %v103 = vsel %vm77, %v22, 0
  %v106 = vsel %vm77, %v23, 0
  %v109 = vsel %vm77, %v24, 0
  %v112 = vsel %vm77, %v25, 0
  %v115 = vsel %vm77, %v26, 0
  %v118 = vsel %vm77, %v27, 0
  %v121 = vsel %vm77, %v28, 0
  %v124 = vsel %vm77, %v29, 0
  %v127 = vsel %vm77, %v30, 0
  %v130 = vsel %vm77, %v31, 0
  %v133 = vsel %vm77, %v32, 0
  %v136 = vsel %vm77, %v33, 0
  %v139 = vsel %vm77, %v34, 0
  %v142 = vsel %vm77, %v35, 0
  %v145 = vsel %vm77, %v36, 0
  %v148 = vsel %vm77, %v37, 0
  %v151 = vsel %vm77, %v38, 0
  %v154 = vsel %vm77, %v39, 0
  %v157 = vsel %vm77, %v40, 0
  %v160 = vsel %vm77, %v41, 0
  %v163 = vsel %vm77, %v42, 0
  %v166 = vsel %vm77, %v43, 0
  %v169 = vsel %vm77, %v44, 0
  %v172 = vsel %vm77, %v45, 0
  %v175 = vsel %vm77, %v46, 0
  %v178 = vsel %vm77, %v47, 0
  %v181 = vsel %vm77, %v48, 0
  %v184 = vsel %vm77, %v49, 0
  %v187 = vsel %vm77, %v50, 0
  %v190 = vsel %vm77, %v51, 0
  %v193 = vsel %vm77, %v52, 0
  %v196 = vsel %vm77, %v53, 0
  %v199 = vsel %vm77, %v54, 0
  %v202 = vsel %vm77, %v55, 0
  %v205 = vsel %vm77, %v56, 0
  %v208 = vsel %vm77, %v57, 0
  %v211 = vsel %vm77, %v58, 0
  %v214 = vsel %vm77, %v59, 0
  %v217 = vsel %vm77, %v60, 0
  %v220 = vsel %vm77, %v61, 0
  %v223 = vsel %vm77, %v62, 0
  %v226 = vsel %vm77, %v63, 0
  %228 = vmatprep.subr.mxu0 0.0
  %229 = vmatpush1.msra.mxu0 %v64
  %230 = vmatprep.subr.mxu0 0.0
  %231 = vmatpush1.msra.mxu0 %v65
  %232 = vmatprep.subr.mxu0 0.0
  %233 = vmatpush1.msra.mxu0 %v66
  %234 = vmatprep.subr.mxu0 0.0
  %235 = vmatpush1.msra.mxu0 %v67
  %236 = vmatprep.subr.mxu0 0.0
  %237 = vmatpush1.msra.mxu0 %v68
  %238 = vmatprep.subr.mxu0 0.0
  %239 = vmatpush1.msra.mxu0 %v69
  %240 = vmatprep.subr.mxu0 0.0
  %241 = vmatpush1.msra.mxu0 0.0
  %242 = vmatprep.subr.mxu0 0.0
  %243 = vmatpush1.msra.mxu0 0.0
  %244 = vmatprep.subr.mxu0 0.0
  %245 = vmatpush1.msra.mxu0 0.0
  %246 = vmatprep.subr.mxu0 0.0
  %247 = vmatpush1.msra.mxu0 0.0
  %248 = vmatprep.subr.mxu0 0.0
  %249 = vmatpush1.msra.mxu0 0.0
  %250 = vmatprep.subr.mxu0 0.0
  %251 = vmatpush1.msra.mxu0 0.0
  %252 = vmatprep.subr.mxu0 0.0
  %253 = vmatpush1.msra.mxu0 0.0
  %254 = vmatprep.subr.mxu0 0.0
  %255 = vmatpush1.msra.mxu0 0.0
  %256 = vmatprep.subr.mxu0 0.0
  %257 = vmatpush1.msra.mxu0 0.0
  %258 = vmatprep.subr.mxu0 0.0
  %259 = vmatpush1.msra.mxu0 0.0
  %260 = vmatprep.subr.mxu0 0.0
  %261 = vmatpush1.msra.mxu0 0.0
  %262 = vmatprep.subr.mxu0 0.0
  %263 = vmatpush1.msra.mxu0 0.0
  %264 = vmatprep.subr.mxu0 0.0
  %265 = vmatpush1.msra.mxu0 0.0
  %266 = vmatprep.subr.mxu0 0.0
  %267 = vmatpush1.msra.mxu0 0.0
  %268 = vmatprep.subr.mxu0 0.0
  %269 = vmatpush1.msra.mxu0 0.0
  %270 = vmatprep.subr.mxu0 0.0
  %271 = vmatpush1.msra.mxu0 0.0
  %272 = vmatprep.subr.mxu0 0.0
  %273 = vmatpush1.msra.mxu0 0.0
  %274 = vmatprep.subr.mxu0 0.0
  %275 = vmatpush1.msra.mxu0 0.0
  %276 = vmatprep.subr.mxu0 0.0
  %277 = vmatpush1.msra.mxu0 0.0
  %278 = vmatprep.subr.mxu0 0.0
  %279 = vmatpush1.msra.mxu0 0.0
  %280 = vmatprep.subr.mxu0 0.0
  %281 = vmatpush1.msra.mxu0 0.0
  %282 = vmatprep.subr.mxu0 0.0
  %283 = vmatpush1.msra.mxu0 0.0
  %284 = vmatprep.subr.mxu0 0.0
  %285 = vmatpush1.msra.mxu0 0.0
  %286 = vmatprep.subr.mxu0 0.0
  %287 = vmatpush1.msra.mxu0 0.0
  %288 = vmatprep.subr.mxu0 0.0
  %289 = vmatpush1.msra.mxu0 0.0
  %290 = vmatprep.subr.mxu0 0.0
  %291 = vmatpush1.msra.mxu0 0.0
  %292 = vmatprep.mubr.f32.mxu0 0.0
  %293 = vmatmul.mubr.f32.gmra.mrb[0].mxu0 %v79
  %v294 = vpop.f32.mrb[0].mxu0
  %v295 = vadd.f32 %v75, %v294
  %v296 = vpop.f32.mrb[0].mxu0
  %297 = vmatprep.mubr.f32.mxu0 0.0
  %298 = vmatmul.mubr.f32.gmra.mrb[0].mxu0 %v82
  %v299 = vpop.f32.mrb[0].mxu0
  %v300 = vadd.f32 %v75, %v299
  %v301 = vpop.f32.mrb[0].mxu0
  %302 = vmatprep.mubr.f32.mxu0 0.0
  %303 = vmatmul.mubr.f32.gmra.mrb[0].mxu0 %v85
  %v304 = vpop.f32.mrb[0].mxu0
  %v305 = vadd.f32 %v75, %v304
  %v306 = vpop.f32.mrb[0].mxu0
  %307 = vmatprep.mubr.f32.mxu0 0.0
  %308 = vmatmul.mubr.f32.gmra.mrb[0].mxu0 %v88
  %v309 = vpop.f32.mrb[0].mxu0
  %v310 = vadd.f32 %v75, %v309
  %v311 = vpop.f32.mrb[0].mxu0
  %312 = vmatprep.mubr.f32.mxu0 0.0
  %313 = vmatmul.mubr.f32.gmra.mrb[0].mxu0 %v91
  %v314 = vpop.f32.mrb[0].mxu0
  %v315 = vadd.f32 %v75, %v314
  %v316 = vpop.f32.mrb[0].mxu0
  %317 = vmatprep.mubr.f32.mxu0 0.0
  %318 = vmatmul.mubr.f32.gmra.mrb[0].mxu0 %v94
  %v319 = vpop.f32.mrb[0].mxu0
  %v320 = vadd.f32 %v75, %v319
  %v321 = vpop.f32.mrb[0].mxu0
  %322 = vmatprep.mubr.f32.mxu0 0.0
  %323 = vmatmul.mubr.f32.gmra.mrb[0].mxu0 %v97
  %v324 = vpop.f32.mrb[0].mxu0
  %v325 = vadd.f32 %v75, %v324
  %v326 = vpop.f32.mrb[0].mxu0
  %327 = vmatprep.mubr.f32.mxu0 0.0
  %328 = vmatmul.mubr.f32.gmra.mrb[0].mxu0 %v100
  %v329 = vpop.f32.mrb[0].mxu0
  %v330 = vadd.f32 %v75, %v329
  %v331 = vpop.f32.mrb[0].mxu0
  %332 = vmatprep.mubr.f32.mxu0 0.0
  %333 = vmatmul.mubr.f32.gmra.mrb[0].mxu0 %v103
  %v334 = vpop.f32.mrb[0].mxu0
  %v335 = vadd.f32 %v75, %v334
  %v336 = vpop.f32.mrb[0].mxu0
  %337 = vmatprep.mubr.f32.mxu0 0.0
  %338 = vmatmul.mubr.f32.gmra.mrb[0].mxu0 %v106
  %v339 = vpop.f32.mrb[0].mxu0
  %v340 = vadd.f32 %v75, %v339
  %v341 = vpop.f32.mrb[0].mxu0
  %342 = vmatprep.mubr.f32.mxu0 0.0
  %343 = vmatmul.mubr.f32.gmra.mrb[0].mxu0 %v109
  %v344 = vpop.f32.mrb[0].mxu0
  %v345 = vadd.f32 %v75, %v344
  %v346 = vpop.f32.mrb[0].mxu0
  %347 = vmatprep.mubr.f32.mxu0 0.0
  %348 = vmatmul.mubr.f32.gmra.mrb[0].mxu0 %v112
  %v349 = vpop.f32.mrb[0].mxu0
  %v350 = vadd.f32 %v75, %v349
  %v351 = vpop.f32.mrb[0].mxu0
  %352 = vmatprep.mubr.f32.mxu0 0.0
  %353 = vmatmul.mubr.f32.gmra.mrb[0].mxu0 %v115
  %v354 = vpop.f32.mrb[0].mxu0
  %v355 = vadd.f32 %v75, %v354
  %v356 = vpop.f32.mrb[0].mxu0
  %357 = vmatprep.mubr.f32.mxu0 0.0
  %358 = vmatmul.mubr.f32.gmra.mrb[0].mxu0 %v118
  %v359 = vpop.f32.mrb[0].mxu0
  %v360 = vadd.f32 %v75, %v359
  %v361 = vpop.f32.mrb[0].mxu0
  %362 = vmatprep.mubr.f32.mxu0 0.0
  %363 = vmatmul.mubr.f32.gmra.mrb[0].mxu0 %v121
  %v364 = vpop.f32.mrb[0].mxu0
  %v365 = vadd.f32 %v75, %v364
  %v366 = vpop.f32.mrb[0].mxu0
  %367 = vmatprep.mubr.f32.mxu0 0.0
  %368 = vmatmul.mubr.f32.gmra.mrb[0].mxu0 %v124
  %v369 = vpop.f32.mrb[0].mxu0
  %v370 = vadd.f32 %v75, %v369
  %v371 = vpop.f32.mrb[0].mxu0
  %372 = vmatprep.mubr.f32.mxu0 0.0
  %373 = vmatmul.mubr.f32.gmra.mrb[0].mxu0 %v127
  %v374 = vpop.f32.mrb[0].mxu0
  %v375 = vadd.f32 %v75, %v374
  %v376 = vpop.f32.mrb[0].mxu0
  %377 = vmatprep.mubr.f32.mxu0 0.0
  %378 = vmatmul.mubr.f32.gmra.mrb[0].mxu0 %v130
  %v379 = vpop.f32.mrb[0].mxu0
  %v380 = vadd.f32 %v75, %v379
  %v381 = vpop.f32.mrb[0].mxu0
  %382 = vmatprep.mubr.f32.mxu0 0.0
  %383 = vmatmul.mubr.f32.gmra.mrb[0].mxu0 %v133
  %v384 = vpop.f32.mrb[0].mxu0
  %v385 = vadd.f32 %v75, %v384
  %v386 = vpop.f32.mrb[0].mxu0
  %387 = vmatprep.mubr.f32.mxu0 0.0
  %388 = vmatmul.mubr.f32.gmra.mrb[0].mxu0 %v136
  %v389 = vpop.f32.mrb[0].mxu0
  %v390 = vadd.f32 %v75, %v389
  %v391 = vpop.f32.mrb[0].mxu0
  %392 = vmatprep.mubr.f32.mxu0 0.0
  %393 = vmatmul.mubr.f32.gmra.mrb[0].mxu0 %v139
  %v394 = vpop.f32.mrb[0].mxu0
  %v395 = vadd.f32 %v75, %v394
  %v396 = vpop.f32.mrb[0].mxu0
  %397 = vmatprep.mubr.f32.mxu0 0.0
  %398 = vmatmul.mubr.f32.gmra.mrb[0].mxu0 %v142
  %v399 = vpop.f32.mrb[0].mxu0
  %v400 = vadd.f32 %v75, %v399
  %v401 = vpop.f32.mrb[0].mxu0
  %402 = vmatprep.mubr.f32.mxu0 0.0
  %403 = vmatmul.mubr.f32.gmra.mrb[0].mxu0 %v145
  %v404 = vpop.f32.mrb[0].mxu0
  %v405 = vadd.f32 %v75, %v404
  %v406 = vpop.f32.mrb[0].mxu0
  %407 = vmatprep.mubr.f32.mxu0 0.0
  %408 = vmatmul.mubr.f32.gmra.mrb[0].mxu0 %v148
  %v409 = vpop.f32.mrb[0].mxu0
  %v410 = vadd.f32 %v75, %v409
  %v411 = vpop.f32.mrb[0].mxu0
  %412 = vmatprep.mubr.f32.mxu0 0.0
  %413 = vmatmul.mubr.f32.gmra.mrb[0].mxu0 %v151
  %v414 = vpop.f32.mrb[0].mxu0
  %v415 = vadd.f32 %v75, %v414
  %v416 = vpop.f32.mrb[0].mxu0
  %417 = vmatprep.mubr.f32.mxu0 0.0
  %418 = vmatmul.mubr.f32.gmra.mrb[0].mxu0 %v154
  %v419 = vpop.f32.mrb[0].mxu0
  %v420 = vadd.f32 %v75, %v419
  %v421 = vpop.f32.mrb[0].mxu0
  %422 = vmatprep.mubr.f32.mxu0 0.0
  %423 = vmatmul.mubr.f32.gmra.mrb[0].mxu0 %v157
  %v424 = vpop.f32.mrb[0].mxu0
  %v425 = vadd.f32 %v75, %v424
  %v426 = vpop.f32.mrb[0].mxu0
  %427 = vmatprep.mubr.f32.mxu0 0.0
  %428 = vmatmul.mubr.f32.gmra.mrb[0].mxu0 %v160
  %v429 = vpop.f32.mrb[0].mxu0
  %v430 = vadd.f32 %v75, %v429
  %v431 = vpop.f32.mrb[0].mxu0
  %432 = vmatprep.mubr.f32.mxu0 0.0
  %433 = vmatmul.mubr.f32.gmra.mrb[0].mxu0 %v163
  %v434 = vpop.f32.mrb[0].mxu0
  %v435 = vadd.f32 %v75, %v434
  %v436 = vpop.f32.mrb[0].mxu0
  %437 = vmatprep.mubr.f32.mxu0 0.0
  %438 = vmatmul.mubr.f32.gmra.mrb[0].mxu0 %v166
  %v439 = vpop.f32.mrb[0].mxu0
  %v440 = vadd.f32 %v75, %v439
  %v441 = vpop.f32.mrb[0].mxu0
  %442 = vmatprep.mubr.f32.mxu0 0.0
  %443 = vmatmul.mubr.f32.gmra.mrb[0].mxu0 %v169
  %v444 = vpop.f32.mrb[0].mxu0
  %v445 = vadd.f32 %v75, %v444
  %v446 = vpop.f32.mrb[0].mxu0
  %447 = vmatprep.mubr.f32.mxu0 0.0
  %448 = vmatmul.mubr.f32.gmra.mrb[0].mxu0 %v172
  %v449 = vpop.f32.mrb[0].mxu0
  %v450 = vadd.f32 %v75, %v449
  %v451 = vpop.f32.mrb[0].mxu0
  %452 = vmatprep.mubr.f32.mxu0 0.0
  %453 = vmatmul.mubr.f32.gmra.mrb[0].mxu0 %v175
  %v454 = vpop.f32.mrb[0].mxu0
  %v455 = vadd.f32 %v75, %v454
  %v456 = vpop.f32.mrb[0].mxu0
  %457 = vmatprep.mubr.f32.mxu0 0.0
  %458 = vmatmul.mubr.f32.gmra.mrb[0].mxu0 %v178
  %v459 = vpop.f32.mrb[0].mxu0
  %v460 = vadd.f32 %v75, %v459
  %v461 = vpop.f32.mrb[0].mxu0
  %462 = vmatprep.mubr.f32.mxu0 0.0
  %463 = vmatmul.mubr.f32.gmra.mrb[0].mxu0 %v181
  %v464 = vpop.f32.mrb[0].mxu0
  %v465 = vadd.f32 %v75, %v464
  %v466 = vpop.f32.mrb[0].mxu0
  %467 = vmatprep.mubr.f32.mxu0 0.0
  %468 = vmatmul.mubr.f32.gmra.mrb[0].mxu0 %v184
  %v469 = vpop.f32.mrb[0].mxu0
  %v470 = vadd.f32 %v75, %v469
  %v471 = vpop.f32.mrb[0].mxu0
  %472 = vmatprep.mubr.f32.mxu0 0.0
  %473 = vmatmul.mubr.f32.gmra.mrb[0].mxu0 %v187
  %v474 = vpop.f32.mrb[0].mxu0
  %v475 = vadd.f32 %v75, %v474
  %v476 = vpop.f32.mrb[0].mxu0
  %477 = vmatprep.mubr.f32.mxu0 0.0
  %478 = vmatmul.mubr.f32.gmra.mrb[0].mxu0 %v190
  %v479 = vpop.f32.mrb[0].mxu0
  %v480 = vadd.f32 %v75, %v479
  %v481 = vpop.f32.mrb[0].mxu0
  %482 = vmatprep.mubr.f32.mxu0 0.0
  %483 = vmatmul.mubr.f32.gmra.mrb[0].mxu0 %v193
  %v484 = vpop.f32.mrb[0].mxu0
  %v485 = vadd.f32 %v75, %v484
  %v486 = vpop.f32.mrb[0].mxu0
  %487 = vmatprep.mubr.f32.mxu0 0.0
  %488 = vmatmul.mubr.f32.gmra.mrb[0].mxu0 %v196
  %v489 = vpop.f32.mrb[0].mxu0
  %v490 = vadd.f32 %v75, %v489
  %v491 = vpop.f32.mrb[0].mxu0
  %492 = vmatprep.mubr.f32.mxu0 0.0
  %493 = vmatmul.mubr.f32.gmra.mrb[0].mxu0 %v199
  %v494 = vpop.f32.mrb[0].mxu0
  %v495 = vadd.f32 %v75, %v494
  %v496 = vpop.f32.mrb[0].mxu0
  %497 = vmatprep.mubr.f32.mxu0 0.0
  %498 = vmatmul.mubr.f32.gmra.mrb[0].mxu0 %v202
  %v499 = vpop.f32.mrb[0].mxu0
  %v500 = vadd.f32 %v75, %v499
  %v501 = vpop.f32.mrb[0].mxu0
  %502 = vmatprep.mubr.f32.mxu0 0.0
  %503 = vmatmul.mubr.f32.gmra.mrb[0].mxu0 %v205
  %v504 = vpop.f32.mrb[0].mxu0
  %v505 = vadd.f32 %v75, %v504
  %v506 = vpop.f32.mrb[0].mxu0
  %507 = vmatprep.mubr.f32.mxu0 0.0
  %508 = vmatmul.mubr.f32.gmra.mrb[0].mxu0 %v208
  %v509 = vpop.f32.mrb[0].mxu0
  %v510 = vadd.f32 %v75, %v509
  %v511 = vpop.f32.mrb[0].mxu0
  %512 = vmatprep.mubr.f32.mxu0 0.0
  %513 = vmatmul.mubr.f32.gmra.mrb[0].mxu0 %v211
  %v514 = vpop.f32.mrb[0].mxu0
  %v515 = vadd.f32 %v75, %v514
  %v516 = vpop.f32.mrb[0].mxu0
  %517 = vmatprep.mubr.f32.mxu0 0.0
  %518 = vmatmul.mubr.f32.gmra.mrb[0].mxu0 %v214
  %v519 = vpop.f32.mrb[0].mxu0
  %v520 = vadd.f32 %v75, %v519
  %v521 = vpop.f32.mrb[0].mxu0
  %522 = vmatprep.mubr.f32.mxu0 0.0
  %523 = vmatmul.mubr.f32.gmra.mrb[0].mxu0 %v217
  %v524 = vpop.f32.mrb[0].mxu0
  %v525 = vadd.f32 %v75, %v524
  %v526 = vpop.f32.mrb[0].mxu0
  %527 = vmatprep.mubr.f32.mxu0 0.0
  %528 = vmatmul.mubr.f32.gmra.mrb[0].mxu0 %v220
  %v529 = vpop.f32.mrb[0].mxu0
  %v530 = vadd.f32 %v75, %v529
  %v531 = vpop.f32.mrb[0].mxu0
  %532 = vmatprep.mubr.f32.mxu0 0.0
  %533 = vmatmul.mubr.f32.gmra.mrb[0].mxu0 %v223
  %v534 = vpop.f32.mrb[0].mxu0
  %v535 = vadd.f32 %v75, %v534
  %v536 = vpop.f32.mrb[0].mxu0
  %537 = vmatprep.mubr.f32.mxu0 0.0
  %538 = vmatmul.mubr.f32.gmra.mrb[0].mxu0 %v226
  %v539 = vpop.f32.mrb[0].mxu0
  %v540 = vadd.f32 %v75, %v539
  %v541 = vpop.f32.mrb[0].mxu0
  %542 = vdwg.mxu0
  %v543 = vmax.f32 %v295, 0.0
  %v544 = vmax.f32 %v300, 0.0
  %v545 = vmax.f32 %v305, 0.0
  %v546 = vmax.f32 %v310, 0.0
  %v547 = vmax.f32 %v315, 0.0
  %v548 = vmax.f32 %v320, 0.0
  %v549 = vmax.f32 %v325, 0.0
  %v550 = vmax.f32 %v330, 0.0
  %v551 = vmax.f32 %v335, 0.0
  %v552 = vmax.f32 %v340, 0.0
  %v553 = vmax.f32 %v345, 0.0
  %v554 = vmax.f32 %v350, 0.0
  %v555 = vmax.f32 %v355, 0.0
  %v556 = vmax.f32 %v360, 0.0
  %v557 = vmax.f32 %v365, 0.0
  %v558 = vmax.f32 %v370, 0.0
  %v559 = vmax.f32 %v375, 0.0
  %v560 = vmax.f32 %v380, 0.0
  %v561 = vmax.f32 %v385, 0.0
  %v562 = vmax.f32 %v390, 0.0
  %v563 = vmax.f32 %v395, 0.0
  %v564 = vmax.f32 %v400, 0.0
  %v565 = vmax.f32 %v405, 0.0
  %v566 = vmax.f32 %v410, 0.0
  %v567 = vmax.f32 %v415, 0.0
  %v568 = vmax.f32 %v420, 0.0
  %v569 = vmax.f32 %v425, 0.0
  %v570 = vmax.f32 %v430, 0.0
  %v571 = vmax.f32 %v435, 0.0
  %v572 = vmax.f32 %v440, 0.0
  %v573 = vmax.f32 %v445, 0.0
  %v574 = vmax.f32 %v450, 0.0
  %v575 = vmax.f32 %v455, 0.0
  %v576 = vmax.f32 %v460, 0.0
  %v577 = vmax.f32 %v465, 0.0
  %v578 = vmax.f32 %v470, 0.0
  %v579 = vmax.f32 %v475, 0.0
  %v580 = vmax.f32 %v480, 0.0
  %v581 = vmax.f32 %v485, 0.0
  %v582 = vmax.f32 %v490, 0.0
  %v583 = vmax.f32 %v495, 0.0
  %v584 = vmax.f32 %v500, 0.0
  %v585 = vmax.f32 %v505, 0.0
  %v586 = vmax.f32 %v510, 0.0
  %v587 = vmax.f32 %v515, 0.0
  %v588 = vmax.f32 %v520, 0.0
  %v589 = vmax.f32 %v525, 0.0
  %v590 = vmax.f32 %v530, 0.0
  %v591 = vmax.f32 %v535, 0.0
  %v592 = vmax.f32 %v540, 0.0
  %vm593 = vcmask 261120
  %594 = vst.msk [vmem:[%s3] sm:$0xff] %vm593, %v543
  %595 = vst.msk [vmem:[%s3 + $0x8] sm:$0xff] %vm593, %v544
  %596 = vst.msk [vmem:[%s3 + $0x10] sm:$0xff] %vm593, %v545
  %597 = vst.msk [vmem:[%s3 + $0x18] sm:$0xff] %vm593, %v546
  %598 = vst.msk [vmem:[%s3 + $0x20] sm:$0xff] %vm593, %v547
  %599 = vst.msk [vmem:[%s3 + $0x28] sm:$0xff] %vm593, %v548
  %600 = vst.msk [vmem:[%s3 + $0x30] sm:$0xff] %vm593, %v549
  %601 = vst.msk [vmem:[%s3 + $0x38] sm:$0xff] %vm593, %v550
  %602 = vst.msk [vmem:[%s3 + $0x40] sm:$0xff] %vm593, %v551
  %603 = vst.msk [vmem:[%s3 + $0x48] sm:$0xff] %vm593, %v552
  %604 = vst.msk [vmem:[%s3 + $0x50] sm:$0xff] %vm593, %v553
  %605 = vst.msk [vmem:[%s3 + $0x58] sm:$0xff] %vm593, %v554
  %606 = vst.msk [vmem:[%s3 + $0x60] sm:$0xff] %vm593, %v555
  %607 = vst.msk [vmem:[%s3 + $0x68] sm:$0xff] %vm593, %v556
  %608 = vst.msk [vmem:[%s3 + $0x70] sm:$0xff] %vm593, %v557
  %609 = vst.msk [vmem:[%s3 + $0x78] sm:$0xff] %vm593, %v558
  %610 = vst.msk [vmem:[%s3 + $0x80] sm:$0xff] %vm593, %v559
  %611 = vst.msk [vmem:[%s3 + $0x88] sm:$0xff] %vm593, %v560
  %612 = vst.msk [vmem:[%s3 + $0x90] sm:$0xff] %vm593, %v561
  %613 = vst.msk [vmem:[%s3 + $0x98] sm:$0xff] %vm593, %v562
  %614 = vst.msk [vmem:[%s3 + $0xa0] sm:$0xff] %vm593, %v563
  %615 = vst.msk [vmem:[%s3 + $0xa8] sm:$0xff] %vm593, %v564
  %616 = vst.msk [vmem:[%s3 + $0xb0] sm:$0xff] %vm593, %v565
  %617 = vst.msk [vmem:[%s3 + $0xb8] sm:$0xff] %vm593, %v566
  %618 = vst.msk [vmem:[%s3 + $0xc0] sm:$0xff] %vm593, %v567
  %619 = vst.msk [vmem:[%s3 + $0xc8] sm:$0xff] %vm593, %v568
  %620 = vst.msk [vmem:[%s3 + $0xd0] sm:$0xff] %vm593, %v569
  %621 = vst.msk [vmem:[%s3 + $0xd8] sm:$0xff] %vm593, %v570
  %622 = vst.msk [vmem:[%s3 + $0xe0] sm:$0xff] %vm593, %v571
  %623 = vst.msk [vmem:[%s3 + $0xe8] sm:$0xff] %vm593, %v572
  %624 = vst.msk [vmem:[%s3 + $0xf0] sm:$0xff] %vm593, %v573
  %625 = vst.msk [vmem:[%s3 + $0xf8] sm:$0xff] %vm593, %v574
  %626 = vst.msk [vmem:[%s3 + $0x100] sm:$0xff] %vm593, %v575
  %627 = vst.msk [vmem:[%s3 + $0x108] sm:$0xff] %vm593, %v576
  %628 = vst.msk [vmem:[%s3 + $0x110] sm:$0xff] %vm593, %v577
  %629 = vst.msk [vmem:[%s3 + $0x118] sm:$0xff] %vm593, %v578
  %630 = vst.msk [vmem:[%s3 + $0x120] sm:$0xff] %vm593, %v579
  %631 = vst.msk [vmem:[%s3 + $0x128] sm:$0xff] %vm593, %v580
  %632 = vst.msk [vmem:[%s3 + $0x130] sm:$0xff] %vm593, %v581
  %633 = vst.msk [vmem:[%s3 + $0x138] sm:$0xff] %vm593, %v582
  %634 = vst.msk [vmem:[%s3 + $0x140] sm:$0xff] %vm593, %v583
  %635 = vst.msk [vmem:[%s3 + $0x148] sm:$0xff] %vm593, %v584
  %636 = vst.msk [vmem:[%s3 + $0x150] sm:$0xff] %vm593, %v585
  %637 = vst.msk [vmem:[%s3 + $0x158] sm:$0xff] %vm593, %v586
  %638 = vst.msk [vmem:[%s3 + $0x160] sm:$0xff] %vm593, %v587
  %639 = vst.msk [vmem:[%s3 + $0x168] sm:$0xff] %vm593, %v588
  %640 = vst.msk [vmem:[%s3 + $0x170] sm:$0xff] %vm593, %v589
  %641 = vst.msk [vmem:[%s3 + $0x178] sm:$0xff] %vm593, %v590
  %642 = vst.msk [vmem:[%s3 + $0x180] sm:$0xff] %vm593, %v591
  %643 = vst.msk [vmem:[%s3 + $0x188] sm:$0xff] %vm593, %v592
  // Predicated region
  $region14: #{encoder_ref.4} parent=0 // pred_check
    _
  $region15: #{encoder_ref.4} parent=0 // pred_check_branch
    %645 = sbr.rel (0) target = $region17
  $region16: #{encoder_ref.4} parent=0 // pred_region
    _
  $region17: #{encoder_ref.4} parent=0 // pred_fallthru
    _
  // Predicated region
  $region18: #{encoder_ref.4} parent=0 // pred_check
    _
  $region19: #{encoder_ref.4} parent=0 // pred_check_branch
    %647 = sbr.rel (0) target = $region21
  $region20: #{encoder_ref.4} parent=0 // pred_region
    _
  $region21: #{encoder_ref.4} parent=0 // pred_fallthru
    _

// kernel: encoder_ref.5
$region0: #{encoder_ref.5}
  #allocation0 [shape = 'u32[]', space=smem, size = 0x4, offset = 0x4, fixed_abs, tag = 'smem constant byte address 0x4 - core index']
  #allocation1 [shape = 'u32[144,128]{1,0:T(1,128)}', space=vmem, size = 0x12000, scoped, tag = 'internal scratch']
  %s0 = inlined_call_operand.vmem [shape: f32[81,512], index: 0, kind: input, shape index: {}]
  %s1 = inlined_call_operand.vmem [shape: f32[512,64], index: 1, kind: input, shape index: {}]
  %s2 = inlined_call_operand.vmem [shape: f32[1,64], index: 2, kind: input, shape index: {}]
  %s3 = inlined_call_operand.vmem [shape: f32[81,64], index: 3, kind: output, shape index: {}]
  %s4 = sld [smem:[#allocation0]]
  $region22: #{encoder_ref.5} parent=0
    _
  %s6 = ssub.s32 1, %s4
  %s7 = scalar_select 0, %s6, %s4
  // Predicated region
  $region2: #{encoder_ref.5} parent=0 // pred_check
    _
  $region3: #{encoder_ref.5} parent=0 // pred_check_branch
    %9 = sbr.rel (0) target = $region5
  $region4: #{encoder_ref.5} parent=0 // pred_region
    _
  $region5: #{encoder_ref.5} parent=0 // pred_fallthru
    _
  // Predicated region
  $region6: #{encoder_ref.5} parent=0 // pred_check
    _
  $region7: #{encoder_ref.5} parent=0 // pred_check_branch
    %11 = sbr.rel (0) target = $region9
  $region8: #{encoder_ref.5} parent=0 // pred_region
    _
  $region9: #{encoder_ref.5} parent=0 // pred_fallthru
    _
  // Predicated region
  $region10: #{encoder_ref.5} parent=0 // pred_check
    _
  $region11: #{encoder_ref.5} parent=0 // pred_check_branch
    %13 = sbr.rel (0) target = $region13
  $region12: #{encoder_ref.5} parent=0 // pred_region
    _
  $region13: #{encoder_ref.5} parent=0 // pred_fallthru
    _
  %v14 = vld [vmem:[%s0] sm:$0xff]
  %v15 = vld [vmem:[%s0 + $0x8] sm:$0xff]
  %v16 = vld [vmem:[%s0 + $0x10] sm:$0xff]
  %v17 = vld [vmem:[%s0 + $0x18] sm:$0xff]
  %v18 = vld [vmem:[%s0 + $0x20] sm:$0xff]
  %v19 = vld [vmem:[%s0 + $0x28] sm:$0xff]
  %v20 = vld [vmem:[%s0 + $0x30] sm:$0xff]
  %v21 = vld [vmem:[%s0 + $0x38] sm:$0xff]
  %v22 = vld [vmem:[%s0 + $0x40] sm:$0xff]
  %v23 = vld [vmem:[%s0 + $0x48] sm:$0xff]
  %v24 = vld [vmem:[%s0 + $0x50] sm:$0xff]
  %v25 = vld [vmem:[%s0 + $0x58] sm:$0xff]
  %v26 = vld [vmem:[%s0 + $0x60] sm:$0xff]
  %v27 = vld [vmem:[%s0 + $0x68] sm:$0xff]
  %v28 = vld [vmem:[%s0 + $0x70] sm:$0xff]
  %v29 = vld [vmem:[%s0 + $0x78] sm:$0xff]
  %v30 = vld [vmem:[%s0 + $0x80] sm:$0xff]
  %v31 = vld [vmem:[%s0 + $0x88] sm:$0xff]
  %v32 = vld [vmem:[%s0 + $0x90] sm:$0xff]
  %v33 = vld [vmem:[%s0 + $0x98] sm:$0xff]
  %v34 = vld [vmem:[%s0 + $0xa0] sm:$0xff]
  %v35 = vld [vmem:[%s0 + $0xa8] sm:$0xff]
  %v36 = vld [vmem:[%s0 + $0xb0] sm:$0xff]
  %v37 = vld [vmem:[%s0 + $0xb8] sm:$0xff]
  %v38 = vld [vmem:[%s0 + $0xc0] sm:$0xff]
  %v39 = vld [vmem:[%s0 + $0xc8] sm:$0xff]
  %v40 = vld [vmem:[%s0 + $0xd0] sm:$0xff]
  %v41 = vld [vmem:[%s0 + $0xd8] sm:$0xff]
  %v42 = vld [vmem:[%s0 + $0xe0] sm:$0xff]
  %v43 = vld [vmem:[%s0 + $0xe8] sm:$0xff]
  %v44 = vld [vmem:[%s0 + $0xf0] sm:$0xff]
  %v45 = vld [vmem:[%s0 + $0xf8] sm:$0xff]
  %v46 = vld [vmem:[%s0 + $0x100] sm:$0xff]
  %v47 = vld [vmem:[%s0 + $0x108] sm:$0xff]
  %v48 = vld [vmem:[%s0 + $0x110] sm:$0xff]
  %v49 = vld [vmem:[%s0 + $0x118] sm:$0xff]
  %v50 = vld [vmem:[%s0 + $0x120] sm:$0xff]
  %v51 = vld [vmem:[%s0 + $0x128] sm:$0xff]
  %v52 = vld [vmem:[%s0 + $0x130] sm:$0xff]
  %v53 = vld [vmem:[%s0 + $0x138] sm:$0xff]
  %v54 = vld [vmem:[%s0 + $0x140] sm:$0x1]
  %v55 = vld [vmem:[%s0 + $0x148] sm:$0x1]
  %v56 = vld [vmem:[%s0 + $0x150] sm:$0x1]
  %v57 = vld [vmem:[%s0 + $0x158] sm:$0x1]
  %v58 = vld [vmem:[%s1] sm:$0xff]
  %v59 = vld [vmem:[%s1 + $0x8] sm:$0xff]
  %v60 = vld [vmem:[%s1 + $0x10] sm:$0xff]
  %v61 = vld [vmem:[%s1 + $0x18] sm:$0xff]
  %v62 = vld [vmem:[%s1 + $0x20] sm:$0xff]
  %v63 = vld [vmem:[%s1 + $0x28] sm:$0xff]
  %v64 = vld [vmem:[%s1 + $0x30] sm:$0xff]
  %v65 = vld [vmem:[%s1 + $0x38] sm:$0xff]
  %v66 = vld [vmem:[%s1 + $0x40] sm:$0xff]
  %v67 = vld [vmem:[%s1 + $0x48] sm:$0xff]
  %v68 = vld [vmem:[%s1 + $0x50] sm:$0xff]
  %v69 = vld [vmem:[%s1 + $0x58] sm:$0xff]
  %v70 = vld [vmem:[%s1 + $0x60] sm:$0xff]
  %v71 = vld [vmem:[%s1 + $0x68] sm:$0xff]
  %v72 = vld [vmem:[%s1 + $0x70] sm:$0xff]
  %v73 = vld [vmem:[%s1 + $0x78] sm:$0xff]
  %v74 = vld [vmem:[%s1 + $0x80] sm:$0xff]
  %v75 = vld [vmem:[%s1 + $0x88] sm:$0xff]
  %v76 = vld [vmem:[%s1 + $0x90] sm:$0xff]
  %v77 = vld [vmem:[%s1 + $0x98] sm:$0xff]
  %v78 = vld [vmem:[%s1 + $0xa0] sm:$0xff]
  %v79 = vld [vmem:[%s1 + $0xa8] sm:$0xff]
  %v80 = vld [vmem:[%s1 + $0xb0] sm:$0xff]
  %v81 = vld [vmem:[%s1 + $0xb8] sm:$0xff]
  %v82 = vld [vmem:[%s1 + $0xc0] sm:$0xff]
  %v83 = vld [vmem:[%s1 + $0xc8] sm:$0xff]
  %v84 = vld [vmem:[%s1 + $0xd0] sm:$0xff]
  %v85 = vld [vmem:[%s1 + $0xd8] sm:$0xff]
  %v86 = vld [vmem:[%s1 + $0xe0] sm:$0xff]
  %v87 = vld [vmem:[%s1 + $0xe8] sm:$0xff]
  %v88 = vld [vmem:[%s1 + $0xf0] sm:$0xff]
  %v89 = vld [vmem:[%s1 + $0xf8] sm:$0xff]
  %v90 = vld [vmem:[%s1 + $0x100] sm:$0xff]
  %v91 = vld [vmem:[%s1 + $0x108] sm:$0xff]
  %v92 = vld [vmem:[%s1 + $0x110] sm:$0xff]
  %v93 = vld [vmem:[%s1 + $0x118] sm:$0xff]
  %v94 = vld [vmem:[%s1 + $0x120] sm:$0xff]
  %v95 = vld [vmem:[%s1 + $0x128] sm:$0xff]
  %v96 = vld [vmem:[%s1 + $0x130] sm:$0xff]
  %v97 = vld [vmem:[%s1 + $0x138] sm:$0xff]
  %v98 = vld [vmem:[%s1 + $0x140] sm:$0xff]
  %v99 = vld [vmem:[%s1 + $0x148] sm:$0xff]
  %v100 = vld [vmem:[%s1 + $0x150] sm:$0xff]
  %v101 = vld [vmem:[%s1 + $0x158] sm:$0xff]
  %v102 = vld [vmem:[%s1 + $0x160] sm:$0xff]
  %v103 = vld [vmem:[%s1 + $0x168] sm:$0xff]
  %v104 = vld [vmem:[%s1 + $0x170] sm:$0xff]
  %v105 = vld [vmem:[%s1 + $0x178] sm:$0xff]
  %v106 = vld [vmem:[%s1 + $0x180] sm:$0xff]
  %v107 = vld [vmem:[%s1 + $0x188] sm:$0xff]
  %v108 = vld [vmem:[%s1 + $0x190] sm:$0xff]
  %v109 = vld [vmem:[%s1 + $0x198] sm:$0xff]
  %v110 = vld [vmem:[%s1 + $0x1a0] sm:$0xff]
  %v111 = vld [vmem:[%s1 + $0x1a8] sm:$0xff]
  %v112 = vld [vmem:[%s1 + $0x1b0] sm:$0xff]
  %v113 = vld [vmem:[%s1 + $0x1b8] sm:$0xff]
  %v114 = vld [vmem:[%s1 + $0x1c0] sm:$0xff]
  %v115 = vld [vmem:[%s1 + $0x1c8] sm:$0xff]
  %v116 = vld [vmem:[%s1 + $0x1d0] sm:$0xff]
  %v117 = vld [vmem:[%s1 + $0x1d8] sm:$0xff]
  %v118 = vld [vmem:[%s1 + $0x1e0] sm:$0xff]
  %v119 = vld [vmem:[%s1 + $0x1e8] sm:$0xff]
  %v120 = vld [vmem:[%s1 + $0x1f0] sm:$0xff]
  %v121 = vld [vmem:[%s1 + $0x1f8] sm:$0xff]
  %v122 = vld [vmem:[%s2] sm:$0x1]
  %v124 = vlaneseq
  %v125 = vshrl.u32 %v124, 7
  %v126 = vsub.s32 0, %v125
  %v127 = vrot.slane %v122, %v126
  %129 = vmatprep.subr.mxu0 0.0
  %130 = vmatpush1.msra.mxu0 %v58
  %131 = vmatprep.subr.mxu0 0.0
  %132 = vmatpush1.msra.mxu0 %v59
  %133 = vmatprep.subr.mxu0 0.0
  %134 = vmatpush1.msra.mxu0 %v60
  %135 = vmatprep.subr.mxu0 0.0
  %136 = vmatpush1.msra.mxu0 %v61
  %137 = vmatprep.subr.mxu0 0.0
  %138 = vmatpush1.msra.mxu0 %v62
  %139 = vmatprep.subr.mxu0 0.0
  %140 = vmatpush1.msra.mxu0 %v63
  %141 = vmatprep.subr.mxu0 0.0
  %142 = vmatpush1.msra.mxu0 %v64
  %143 = vmatprep.subr.mxu0 0.0
  %144 = vmatpush1.msra.mxu0 %v65
  %145 = vmatprep.subr.mxu0 0.0
  %146 = vmatpush1.msra.mxu0 %v66
  %147 = vmatprep.subr.mxu0 0.0
  %148 = vmatpush1.msra.mxu0 %v67
  %149 = vmatprep.subr.mxu0 0.0
  %150 = vmatpush1.msra.mxu0 %v68
  %151 = vmatprep.subr.mxu0 0.0
  %152 = vmatpush1.msra.mxu0 %v69
  %153 = vmatprep.subr.mxu0 0.0
  %154 = vmatpush1.msra.mxu0 %v70
  %155 = vmatprep.subr.mxu0 0.0
  %156 = vmatpush1.msra.mxu0 %v71
  %157 = vmatprep.subr.mxu0 0.0
  %158 = vmatpush1.msra.mxu0 %v72
  %159 = vmatprep.subr.mxu0 0.0
  %160 = vmatpush1.msra.mxu0 %v73
  %161 = vmatprep.subr.mxu0 0.0
  %162 = vmatpush1.msra.mxu0 %v74
  %163 = vmatprep.subr.mxu0 0.0
  %164 = vmatpush1.msra.mxu0 %v75
  %165 = vmatprep.subr.mxu0 0.0
  %166 = vmatpush1.msra.mxu0 %v76
  %167 = vmatprep.subr.mxu0 0.0
  %168 = vmatpush1.msra.mxu0 %v77
  %169 = vmatprep.subr.mxu0 0.0
  %170 = vmatpush1.msra.mxu0 %v78
  %171 = vmatprep.subr.mxu0 0.0
  %172 = vmatpush1.msra.mxu0 %v79
  %173 = vmatprep.subr.mxu0 0.0
  %174 = vmatpush1.msra.mxu0 %v80
  %175 = vmatprep.subr.mxu0 0.0
  %176 = vmatpush1.msra.mxu0 %v81
  %177 = vmatprep.subr.mxu0 0.0
  %178 = vmatpush1.msra.mxu0 %v82
  %179 = vmatprep.subr.mxu0 0.0
  %180 = vmatpush1.msra.mxu0 %v83
  %181 = vmatprep.subr.mxu0 0.0
  %182 = vmatpush1.msra.mxu0 %v84
  %183 = vmatprep.subr.mxu0 0.0
  %184 = vmatpush1.msra.mxu0 %v85
  %185 = vmatprep.subr.mxu0 0.0
  %186 = vmatpush1.msra.mxu0 %v86
  %187 = vmatprep.subr.mxu0 0.0
  %188 = vmatpush1.msra.mxu0 %v87
  %189 = vmatprep.subr.mxu0 0.0
  %190 = vmatpush1.msra.mxu0 %v88
  %191 = vmatprep.subr.mxu0 0.0
  %192 = vmatpush1.msra.mxu0 %v89
  %193 = vmatprep.mubr.f32.mxu0 %v15
  %194 = vmatmul.mubr.f32.gmra.mrb[0].mxu0 %v14
  %v195 = vpop.f32.mrb[0].mxu0
  %v196 = vadd.f32 %v127, %v195
  %v197 = vpop.f32.mrb[0].mxu0
  %198 = vmatprep.mubr.f32.mxu0 %v19
  %199 = vmatmul.mubr.f32.gmra.mrb[0].mxu0 %v18
  %v200 = vpop.f32.mrb[0].mxu0
  %v201 = vadd.f32 %v127, %v200
  %v202 = vpop.f32.mrb[0].mxu0
  %203 = vmatprep.mubr.f32.mxu0 %v23
  %204 = vmatmul.mubr.f32.gmra.mrb[0].mxu0 %v22
  %v205 = vpop.f32.mrb[0].mxu0
  %v206 = vadd.f32 %v127, %v205
  %v207 = vpop.f32.mrb[0].mxu0
  %208 = vmatprep.mubr.f32.mxu0 %v27
  %209 = vmatmul.mubr.f32.gmra.mrb[0].mxu0 %v26
  %v210 = vpop.f32.mrb[0].mxu0
  %v211 = vadd.f32 %v127, %v210
  %v212 = vpop.f32.mrb[0].mxu0
  %213 = vmatprep.mubr.f32.mxu0 %v31
  %214 = vmatmul.mubr.f32.gmra.mrb[0].mxu0 %v30
  %v215 = vpop.f32.mrb[0].mxu0
  %v216 = vadd.f32 %v127, %v215
  %v217 = vpop.f32.mrb[0].mxu0
  %218 = vmatprep.mubr.f32.mxu0 %v35
  %219 = vmatmul.mubr.f32.gmra.mrb[0].mxu0 %v34
  %v220 = vpop.f32.mrb[0].mxu0
  %v221 = vadd.f32 %v127, %v220
  %v222 = vpop.f32.mrb[0].mxu0
  %223 = vmatprep.mubr.f32.mxu0 %v39
  %224 = vmatmul.mubr.f32.gmra.mrb[0].mxu0 %v38
  %v225 = vpop.f32.mrb[0].mxu0
  %v226 = vadd.f32 %v127, %v225
  %v227 = vpop.f32.mrb[0].mxu0
  %228 = vmatprep.mubr.f32.mxu0 %v43
  %229 = vmatmul.mubr.f32.gmra.mrb[0].mxu0 %v42
  %v230 = vpop.f32.mrb[0].mxu0
  %v231 = vadd.f32 %v127, %v230
  %v232 = vpop.f32.mrb[0].mxu0
  %233 = vmatprep.mubr.f32.mxu0 %v47
  %234 = vmatmul.mubr.f32.gmra.mrb[0].mxu0 %v46
  %v235 = vpop.f32.mrb[0].mxu0
  %v236 = vadd.f32 %v127, %v235
  %v237 = vpop.f32.mrb[0].mxu0
  %238 = vmatprep.mubr.f32.mxu0 %v51
  %239 = vmatmul.mubr.f32.gmra.mrb[0].mxu0 %v50
  %v240 = vpop.f32.mrb[0].mxu0
  %v241 = vadd.f32 %v127, %v240
  %v242 = vpop.f32.mrb[0].mxu0
  %243 = vmatprep.mubr.f32.mxu0 %v55
  %244 = vmatmul.mubr.f32.gmra.mrb[0].mxu0 %v54
  %v245 = vpop.f32.mrb[0].mxu0
  %v246 = vadd.f32 %v127, %v245
  %v247 = vpop.f32.mrb[0].mxu0
  %248 = vdwg.mxu0
  %249 = vmatprep.subr.mxu0 0.0
  %250 = vmatpush1.msra.mxu0 %v90
  %251 = vmatprep.subr.mxu0 0.0
  %252 = vmatpush1.msra.mxu0 %v91
  %253 = vmatprep.subr.mxu0 0.0
  %254 = vmatpush1.msra.mxu0 %v92
  %255 = vmatprep.subr.mxu0 0.0
  %256 = vmatpush1.msra.mxu0 %v93
  %257 = vmatprep.subr.mxu0 0.0
  %258 = vmatpush1.msra.mxu0 %v94
  %259 = vmatprep.subr.mxu0 0.0
  %260 = vmatpush1.msra.mxu0 %v95
  %261 = vmatprep.subr.mxu0 0.0
  %262 = vmatpush1.msra.mxu0 %v96
  %263 = vmatprep.subr.mxu0 0.0
  %264 = vmatpush1.msra.mxu0 %v97
  %265 = vmatprep.subr.mxu0 0.0
  %266 = vmatpush1.msra.mxu0 %v98
  %267 = vmatprep.subr.mxu0 0.0
  %268 = vmatpush1.msra.mxu0 %v99
  %269 = vmatprep.subr.mxu0 0.0
  %270 = vmatpush1.msra.mxu0 %v100
  %271 = vmatprep.subr.mxu0 0.0
  %272 = vmatpush1.msra.mxu0 %v101
  %273 = vmatprep.subr.mxu0 0.0
  %274 = vmatpush1.msra.mxu0 %v102
  %275 = vmatprep.subr.mxu0 0.0
  %276 = vmatpush1.msra.mxu0 %v103
  %277 = vmatprep.subr.mxu0 0.0
  %278 = vmatpush1.msra.mxu0 %v104
  %279 = vmatprep.subr.mxu0 0.0
  %280 = vmatpush1.msra.mxu0 %v105
  %281 = vmatprep.subr.mxu0 0.0
  %282 = vmatpush1.msra.mxu0 %v106
  %283 = vmatprep.subr.mxu0 0.0
  %284 = vmatpush1.msra.mxu0 %v107
  %285 = vmatprep.subr.mxu0 0.0
  %286 = vmatpush1.msra.mxu0 %v108
  %287 = vmatprep.subr.mxu0 0.0
  %288 = vmatpush1.msra.mxu0 %v109
  %289 = vmatprep.subr.mxu0 0.0
  %290 = vmatpush1.msra.mxu0 %v110
  %291 = vmatprep.subr.mxu0 0.0
  %292 = vmatpush1.msra.mxu0 %v111
  %293 = vmatprep.subr.mxu0 0.0
  %294 = vmatpush1.msra.mxu0 %v112
  %295 = vmatprep.subr.mxu0 0.0
  %296 = vmatpush1.msra.mxu0 %v113
  %297 = vmatprep.subr.mxu0 0.0
  %298 = vmatpush1.msra.mxu0 %v114
  %299 = vmatprep.subr.mxu0 0.0
  %300 = vmatpush1.msra.mxu0 %v115
  %301 = vmatprep.subr.mxu0 0.0
  %302 = vmatpush1.msra.mxu0 %v116
  %303 = vmatprep.subr.mxu0 0.0
  %304 = vmatpush1.msra.mxu0 %v117
  %305 = vmatprep.subr.mxu0 0.0
  %306 = vmatpush1.msra.mxu0 %v118
  %307 = vmatprep.subr.mxu0 0.0
  %308 = vmatpush1.msra.mxu0 %v119
  %309 = vmatprep.subr.mxu0 0.0
  %310 = vmatpush1.msra.mxu0 %v120
  %311 = vmatprep.subr.mxu0 0.0
  %312 = vmatpush1.msra.mxu0 %v121
  %313 = vmatprep.mubr.f32.mxu0 %v17
  %314 = vmatmul.mubr.f32.gmra.mrb[0].mxu0 %v16
  %v315 = vpop.f32.mrb[0].mxu0
  %v316 = vadd.f32 %v196, %v315
  %v317 = vpop.f32.mrb[0].mxu0
  %318 = vmatprep.mubr.f32.mxu0 %v21
  %319 = vmatmul.mubr.f32.gmra.mrb[0].mxu0 %v20
  %v320 = vpop.f32.mrb[0].mxu0
  %v321 = vadd.f32 %v201, %v320
  %v322 = vpop.f32.mrb[0].mxu0
  %323 = vmatprep.mubr.f32.mxu0 %v25
  %324 = vmatmul.mubr.f32.gmra.mrb[0].mxu0 %v24
  %v325 = vpop.f32.mrb[0].mxu0
  %v326 = vadd.f32 %v206, %v325
  %v327 = vpop.f32.mrb[0].mxu0
  %328 = vmatprep.mubr.f32.mxu0 %v29
  %329 = vmatmul.mubr.f32.gmra.mrb[0].mxu0 %v28
  %v330 = vpop.f32.mrb[0].mxu0
  %v331 = vadd.f32 %v211, %v330
  %v332 = vpop.f32.mrb[0].mxu0
  %333 = vmatprep.mubr.f32.mxu0 %v33
  %334 = vmatmul.mubr.f32.gmra.mrb[0].mxu0 %v32
  %v335 = vpop.f32.mrb[0].mxu0
  %v336 = vadd.f32 %v216, %v335
  %v337 = vpop.f32.mrb[0].mxu0
  %338 = vmatprep.mubr.f32.mxu0 %v37
  %339 = vmatmul.mubr.f32.gmra.mrb[0].mxu0 %v36
  %v340 = vpop.f32.mrb[0].mxu0
  %v341 = vadd.f32 %v221, %v340
  %v342 = vpop.f32.mrb[0].mxu0
  %343 = vmatprep.mubr.f32.mxu0 %v41
  %344 = vmatmul.mubr.f32.gmra.mrb[0].mxu0 %v40
  %v345 = vpop.f32.mrb[0].mxu0
  %v346 = vadd.f32 %v226, %v345
  %v347 = vpop.f32.mrb[0].mxu0
  %348 = vmatprep.mubr.f32.mxu0 %v45
  %349 = vmatmul.mubr.f32.gmra.mrb[0].mxu0 %v44
  %v350 = vpop.f32.mrb[0].mxu0
  %v351 = vadd.f32 %v231, %v350
  %v352 = vpop.f32.mrb[0].mxu0
  %353 = vmatprep.mubr.f32.mxu0 %v49
  %354 = vmatmul.mubr.f32.gmra.mrb[0].mxu0 %v48
  %v355 = vpop.f32.mrb[0].mxu0
  %v356 = vadd.f32 %v236, %v355
  %v357 = vpop.f32.mrb[0].mxu0
  %358 = vmatprep.mubr.f32.mxu0 %v53
  %359 = vmatmul.mubr.f32.gmra.mrb[0].mxu0 %v52
  %v360 = vpop.f32.mrb[0].mxu0
  %v361 = vadd.f32 %v241, %v360
  %v362 = vpop.f32.mrb[0].mxu0
  %363 = vmatprep.mubr.f32.mxu0 %v57
  %364 = vmatmul.mubr.f32.gmra.mrb[0].mxu0 %v56
  %v365 = vpop.f32.mrb[0].mxu0
  %v366 = vadd.f32 %v246, %v365
  %v367 = vpop.f32.mrb[0].mxu0
  %368 = vdwg.mxu0
  %v369 = vmax.f32 %v316, 0.0
  %v370 = vmax.f32 %v321, 0.0
  %v371 = vmax.f32 %v326, 0.0
  %v372 = vmax.f32 %v331, 0.0
  %v373 = vmax.f32 %v336, 0.0
  %v374 = vmax.f32 %v341, 0.0
  %v375 = vmax.f32 %v346, 0.0
  %v376 = vmax.f32 %v351, 0.0
  %v377 = vmax.f32 %v356, 0.0
  %v378 = vmax.f32 %v361, 0.0
  %v379 = vmax.f32 %v366, 0.0
  %vm380 = vcmask 523264
  %381 = vst.msk [vmem:[%s3] sm:$0xff] %vm380, %v369
  %382 = vst.msk [vmem:[%s3 + $0x8] sm:$0xff] %vm380, %v370
  %383 = vst.msk [vmem:[%s3 + $0x10] sm:$0xff] %vm380, %v371
  %384 = vst.msk [vmem:[%s3 + $0x18] sm:$0xff] %vm380, %v372
  %385 = vst.msk [vmem:[%s3 + $0x20] sm:$0xff] %vm380, %v373
  %386 = vst.msk [vmem:[%s3 + $0x28] sm:$0xff] %vm380, %v374
  %387 = vst.msk [vmem:[%s3 + $0x30] sm:$0xff] %vm380, %v375
  %388 = vst.msk [vmem:[%s3 + $0x38] sm:$0xff] %vm380, %v376
  %389 = vst.msk [vmem:[%s3 + $0x40] sm:$0xff] %vm380, %v377
  %390 = vst.msk [vmem:[%s3 + $0x48] sm:$0xff] %vm380, %v378
  %vm391 = vcmask 516096
  %392 = vst.msk [vmem:[%s3 + $0x50] sm:$0x1] %vm391, %v379
  // Predicated region
  $region14: #{encoder_ref.5} parent=0 // pred_check
    _
  $region15: #{encoder_ref.5} parent=0 // pred_check_branch
    %394 = sbr.rel (0) target = $region17
  $region16: #{encoder_ref.5} parent=0 // pred_region
    _
  $region17: #{encoder_ref.5} parent=0 // pred_fallthru
    _
  // Predicated region
  $region18: #{encoder_ref.5} parent=0 // pred_check
    _
  $region19: #{encoder_ref.5} parent=0 // pred_check_branch
    %396 = sbr.rel (0) target = $region21
  $region20: #{encoder_ref.5} parent=0 // pred_region
    _
  $region21: #{encoder_ref.5} parent=0 // pred_fallthru
    _

// kernel: encoder_ref.6
$region0: #{encoder_ref.6}
  #allocation0 [shape = 'u32[]', space=smem, size = 0x4, offset = 0x4, fixed_abs, tag = 'smem constant byte address 0x4 - core index']
  #allocation1 [shape = 'u32[144,128]{1,0:T(1,128)}', space=vmem, size = 0x12000, scoped, tag = 'internal scratch']
  %s0 = inlined_call_operand.vmem [shape: f32[16,576], index: 0, kind: input, shape index: {}]
  %s1 = inlined_call_operand.vmem [shape: f32[576,128], index: 1, kind: input, shape index: {}]
  %s2 = inlined_call_operand.vmem [shape: f32[1,128], index: 2, kind: input, shape index: {}]
  %s3 = inlined_call_operand.vmem [shape: f32[16,128], index: 3, kind: output, shape index: {}]
  %s4 = sld [smem:[#allocation0]]
  $region22: #{encoder_ref.6} parent=0
    _
  %s6 = ssub.s32 1, %s4
  %s7 = scalar_select 0, %s6, %s4
  // Predicated region
  $region2: #{encoder_ref.6} parent=0 // pred_check
    _
  $region3: #{encoder_ref.6} parent=0 // pred_check_branch
    %9 = sbr.rel (0) target = $region5
  $region4: #{encoder_ref.6} parent=0 // pred_region
    _
  $region5: #{encoder_ref.6} parent=0 // pred_fallthru
    _
  // Predicated region
  $region6: #{encoder_ref.6} parent=0 // pred_check
    _
  $region7: #{encoder_ref.6} parent=0 // pred_check_branch
    %11 = sbr.rel (0) target = $region9
  $region8: #{encoder_ref.6} parent=0 // pred_region
    _
  $region9: #{encoder_ref.6} parent=0 // pred_fallthru
    _
  // Predicated region
  $region10: #{encoder_ref.6} parent=0 // pred_check
    _
  $region11: #{encoder_ref.6} parent=0 // pred_check_branch
    %13 = sbr.rel (0) target = $region13
  $region12: #{encoder_ref.6} parent=0 // pred_region
    _
  $region13: #{encoder_ref.6} parent=0 // pred_fallthru
    _
  %v14 = vld [vmem:[%s0] sm:$0xff]
  %v15 = vld [vmem:[%s0 + $0x8] sm:$0xff]
  %v16 = vld [vmem:[%s0 + $0x10] sm:$0xff]
  %v17 = vld [vmem:[%s0 + $0x18] sm:$0xff]
  %v18 = vld [vmem:[%s0 + $0x20] sm:$0xff]
  %v19 = vld [vmem:[%s0 + $0x28] sm:$0xff]
  %v20 = vld [vmem:[%s0 + $0x30] sm:$0xff]
  %v21 = vld [vmem:[%s0 + $0x38] sm:$0xff]
  %v22 = vld [vmem:[%s0 + $0x40] sm:$0xff]
  %v23 = vld [vmem:[%s0 + $0x48] sm:$0xff]
  %v24 = vld [vmem:[%s1] sm:$0xff]
  %v25 = vld [vmem:[%s1 + $0x8] sm:$0xff]
  %v26 = vld [vmem:[%s1 + $0x10] sm:$0xff]
  %v27 = vld [vmem:[%s1 + $0x18] sm:$0xff]
  %v28 = vld [vmem:[%s1 + $0x20] sm:$0xff]
  %v29 = vld [vmem:[%s1 + $0x28] sm:$0xff]
  %v30 = vld [vmem:[%s1 + $0x30] sm:$0xff]
  %v31 = vld [vmem:[%s1 + $0x38] sm:$0xff]
  %v32 = vld [vmem:[%s1 + $0x40] sm:$0xff]
  %v33 = vld [vmem:[%s1 + $0x48] sm:$0xff]
  %v34 = vld [vmem:[%s1 + $0x50] sm:$0xff]
  %v35 = vld [vmem:[%s1 + $0x58] sm:$0xff]
  %v36 = vld [vmem:[%s1 + $0x60] sm:$0xff]
  %v37 = vld [vmem:[%s1 + $0x68] sm:$0xff]
  %v38 = vld [vmem:[%s1 + $0x70] sm:$0xff]
  %v39 = vld [vmem:[%s1 + $0x78] sm:$0xff]
  %v40 = vld [vmem:[%s1 + $0x80] sm:$0xff]
  %v41 = vld [vmem:[%s1 + $0x88] sm:$0xff]
  %v42 = vld [vmem:[%s1 + $0x90] sm:$0xff]
  %v43 = vld [vmem:[%s1 + $0x98] sm:$0xff]
  %v44 = vld [vmem:[%s1 + $0xa0] sm:$0xff]
  %v45 = vld [vmem:[%s1 + $0xa8] sm:$0xff]
  %v46 = vld [vmem:[%s1 + $0xb0] sm:$0xff]
  %v47 = vld [vmem:[%s1 + $0xb8] sm:$0xff]
  %v48 = vld [vmem:[%s1 + $0xc0] sm:$0xff]
  %v49 = vld [vmem:[%s1 + $0xc8] sm:$0xff]
  %v50 = vld [vmem:[%s1 + $0xd0] sm:$0xff]
  %v51 = vld [vmem:[%s1 + $0xd8] sm:$0xff]
  %v52 = vld [vmem:[%s1 + $0xe0] sm:$0xff]
  %v53 = vld [vmem:[%s1 + $0xe8] sm:$0xff]
  %v54 = vld [vmem:[%s1 + $0xf0] sm:$0xff]
  %v55 = vld [vmem:[%s1 + $0xf8] sm:$0xff]
  %v56 = vld [vmem:[%s1 + $0x100] sm:$0xff]
  %v57 = vld [vmem:[%s1 + $0x108] sm:$0xff]
  %v58 = vld [vmem:[%s1 + $0x110] sm:$0xff]
  %v59 = vld [vmem:[%s1 + $0x118] sm:$0xff]
  %v60 = vld [vmem:[%s1 + $0x120] sm:$0xff]
  %v61 = vld [vmem:[%s1 + $0x128] sm:$0xff]
  %v62 = vld [vmem:[%s1 + $0x130] sm:$0xff]
  %v63 = vld [vmem:[%s1 + $0x138] sm:$0xff]
  %v64 = vld [vmem:[%s1 + $0x140] sm:$0xff]
  %v65 = vld [vmem:[%s1 + $0x148] sm:$0xff]
  %v66 = vld [vmem:[%s1 + $0x150] sm:$0xff]
  %v67 = vld [vmem:[%s1 + $0x158] sm:$0xff]
  %v68 = vld [vmem:[%s1 + $0x160] sm:$0xff]
  %v69 = vld [vmem:[%s1 + $0x168] sm:$0xff]
  %v70 = vld [vmem:[%s1 + $0x170] sm:$0xff]
  %v71 = vld [vmem:[%s1 + $0x178] sm:$0xff]
  %v72 = vld [vmem:[%s1 + $0x180] sm:$0xff]
  %v73 = vld [vmem:[%s1 + $0x188] sm:$0xff]
  %v74 = vld [vmem:[%s1 + $0x190] sm:$0xff]
  %v75 = vld [vmem:[%s1 + $0x198] sm:$0xff]
  %v76 = vld [vmem:[%s1 + $0x1a0] sm:$0xff]
  %v77 = vld [vmem:[%s1 + $0x1a8] sm:$0xff]
  %v78 = vld [vmem:[%s1 + $0x1b0] sm:$0xff]
  %v79 = vld [vmem:[%s1 + $0x1b8] sm:$0xff]
  %v80 = vld [vmem:[%s1 + $0x1c0] sm:$0xff]
  %v81 = vld [vmem:[%s1 + $0x1c8] sm:$0xff]
  %v82 = vld [vmem:[%s1 + $0x1d0] sm:$0xff]
  %v83 = vld [vmem:[%s1 + $0x1d8] sm:$0xff]
  %v84 = vld [vmem:[%s1 + $0x1e0] sm:$0xff]
  %v85 = vld [vmem:[%s1 + $0x1e8] sm:$0xff]
  %v86 = vld [vmem:[%s1 + $0x1f0] sm:$0xff]
  %v87 = vld [vmem:[%s1 + $0x1f8] sm:$0xff]
  %v88 = vld [vmem:[%s1 + $0x200] sm:$0xff]
  %v89 = vld [vmem:[%s1 + $0x208] sm:$0xff]
  %v90 = vld [vmem:[%s1 + $0x210] sm:$0xff]
  %v91 = vld [vmem:[%s1 + $0x218] sm:$0xff]
  %v92 = vld [vmem:[%s1 + $0x220] sm:$0xff]
  %v93 = vld [vmem:[%s1 + $0x228] sm:$0xff]
  %v94 = vld [vmem:[%s1 + $0x230] sm:$0xff]
  %v95 = vld [vmem:[%s1 + $0x238] sm:$0xff]
  %v96 = vld [vmem:[%s2] sm:$0x1]
  %v98 = vlaneseq
  %v99 = vshrl.u32 %v98, 7
  %v100 = vsub.s32 0, %v99
  %v101 = vrot.slane %v96, %v100
  %vm103 = vcmask 523264
  %v105 = vsel %vm103, %v18, 0
  %v108 = vsel %vm103, %v23, 0
  %110 = vmatprep.subr.mxu0 0.0
  %111 = vmatpush1.msra.mxu0 %v24
  %112 = vmatprep.subr.mxu0 0.0
  %113 = vmatpush1.msra.mxu0 %v25
  %114 = vmatprep.subr.mxu0 0.0
  %115 = vmatpush1.msra.mxu0 %v26
  %116 = vmatprep.subr.mxu0 0.0
  %117 = vmatpush1.msra.mxu0 %v27
  %118 = vmatprep.subr.mxu0 0.0
  %119 = vmatpush1.msra.mxu0 %v28
  %120 = vmatprep.subr.mxu0 0.0
  %121 = vmatpush1.msra.mxu0 %v29
  %122 = vmatprep.subr.mxu0 0.0
  %123 = vmatpush1.msra.mxu0 %v30
  %124 = vmatprep.subr.mxu0 0.0
  %125 = vmatpush1.msra.mxu0 %v31
  %126 = vmatprep.subr.mxu0 0.0
  %127 = vmatpush1.msra.mxu0 %v32
  %128 = vmatprep.subr.mxu0 0.0
  %129 = vmatpush1.msra.mxu0 %v33
  %130 = vmatprep.subr.mxu0 0.0
  %131 = vmatpush1.msra.mxu0 %v34
  %132 = vmatprep.subr.mxu0 0.0
  %133 = vmatpush1.msra.mxu0 %v35
  %134 = vmatprep.subr.mxu0 0.0
  %135 = vmatpush1.msra.mxu0 %v36
  %136 = vmatprep.subr.mxu0 0.0
  %137 = vmatpush1.msra.mxu0 %v37
  %138 = vmatprep.subr.mxu0 0.0
  %139 = vmatpush1.msra.mxu0 %v38
  %140 = vmatprep.subr.mxu0 0.0
  %141 = vmatpush1.msra.mxu0 %v39
  %142 = vmatprep.subr.mxu0 0.0
  %143 = vmatpush1.msra.mxu0 %v40
  %144 = vmatprep.subr.mxu0 0.0
  %145 = vmatpush1.msra.mxu0 %v41
  %146 = vmatprep.subr.mxu0 0.0
  %147 = vmatpush1.msra.mxu0 %v42
  %148 = vmatprep.subr.mxu0 0.0
  %149 = vmatpush1.msra.mxu0 %v43
  %150 = vmatprep.subr.mxu0 0.0
  %151 = vmatpush1.msra.mxu0 %v44
  %152 = vmatprep.subr.mxu0 0.0
  %153 = vmatpush1.msra.mxu0 %v45
  %154 = vmatprep.subr.mxu0 0.0
  %155 = vmatpush1.msra.mxu0 %v46
  %156 = vmatprep.subr.mxu0 0.0
  %157 = vmatpush1.msra.mxu0 %v47
  %158 = vmatprep.subr.mxu0 0.0
  %159 = vmatpush1.msra.mxu0 %v48
  %160 = vmatprep.subr.mxu0 0.0
  %161 = vmatpush1.msra.mxu0 %v49
  %162 = vmatprep.subr.mxu0 0.0
  %163 = vmatpush1.msra.mxu0 %v50
  %164 = vmatprep.subr.mxu0 0.0
  %165 = vmatpush1.msra.mxu0 %v51
  %166 = vmatprep.subr.mxu0 0.0
  %167 = vmatpush1.msra.mxu0 %v52
  %168 = vmatprep.subr.mxu0 0.0
  %169 = vmatpush1.msra.mxu0 %v53
  %170 = vmatprep.subr.mxu0 0.0
  %171 = vmatpush1.msra.mxu0 %v54
  %172 = vmatprep.subr.mxu0 0.0
  %173 = vmatpush1.msra.mxu0 %v55
  %174 = vmatprep.mubr.f32.mxu0 %v15
  %175 = vmatmul.mubr.f32.gmra.mrb[0].mxu0 %v14
  %v176 = vpop.f32.mrb[0].mxu0
  %v177 = vadd.f32 %v101, %v176
  %v178 = vpop.f32.mrb[0].mxu0
  %179 = vmatprep.mubr.f32.mxu0 %v20
  %180 = vmatmul.mubr.f32.gmra.mrb[0].mxu0 %v19
  %v181 = vpop.f32.mrb[0].mxu0
  %v182 = vadd.f32 %v101, %v181
  %v183 = vpop.f32.mrb[0].mxu0
  %184 = vdwg.mxu0
  %185 = vmatprep.subr.mxu0 0.0
  %186 = vmatpush1.msra.mxu0 %v56
  %187 = vmatprep.subr.mxu0 0.0
  %188 = vmatpush1.msra.mxu0 %v57
  %189 = vmatprep.subr.mxu0 0.0
  %190 = vmatpush1.msra.mxu0 %v58
  %191 = vmatprep.subr.mxu0 0.0
  %192 = vmatpush1.msra.mxu0 %v59
  %193 = vmatprep.subr.mxu0 0.0
  %194 = vmatpush1.msra.mxu0 %v60
  %195 = vmatprep.subr.mxu0 0.0
  %196 = vmatpush1.msra.mxu0 %v61
  %197 = vmatprep.subr.mxu0 0.0
  %198 = vmatpush1.msra.mxu0 %v62
  %199 = vmatprep.subr.mxu0 0.0
  %200 = vmatpush1.msra.mxu0 %v63
  %201 = vmatprep.subr.mxu0 0.0
  %202 = vmatpush1.msra.mxu0 %v64
  %203 = vmatprep.subr.mxu0 0.0
  %204 = vmatpush1.msra.mxu0 %v65
  %205 = vmatprep.subr.mxu0 0.0
  %206 = vmatpush1.msra.mxu0 %v66
  %207 = vmatprep.subr.mxu0 0.0
  %208 = vmatpush1.msra.mxu0 %v67
  %209 = vmatprep.subr.mxu0 0.0
  %210 = vmatpush1.msra.mxu0 %v68
  %211 = vmatprep.subr.mxu0 0.0
  %212 = vmatpush1.msra.mxu0 %v69
  %213 = vmatprep.subr.mxu0 0.0
  %214 = vmatpush1.msra.mxu0 %v70
  %215 = vmatprep.subr.mxu0 0.0
  %216 = vmatpush1.msra.mxu0 %v71
  %217 = vmatprep.subr.mxu0 0.0
  %218 = vmatpush1.msra.mxu0 %v72
  %219 = vmatprep.subr.mxu0 0.0
  %220 = vmatpush1.msra.mxu0 %v73
  %221 = vmatprep.subr.mxu0 0.0
  %222 = vmatpush1.msra.mxu0 %v74
  %223 = vmatprep.subr.mxu0 0.0
  %224 = vmatpush1.msra.mxu0 %v75
  %225 = vmatprep.subr.mxu0 0.0
  %226 = vmatpush1.msra.mxu0 %v76
  %227 = vmatprep.subr.mxu0 0.0
  %228 = vmatpush1.msra.mxu0 %v77
  %229 = vmatprep.subr.mxu0 0.0
  %230 = vmatpush1.msra.mxu0 %v78
  %231 = vmatprep.subr.mxu0 0.0
  %232 = vmatpush1.msra.mxu0 %v79
  %233 = vmatprep.subr.mxu0 0.0
  %234 = vmatpush1.msra.mxu0 %v80
  %235 = vmatprep.subr.mxu0 0.0
  %236 = vmatpush1.msra.mxu0 %v81
  %237 = vmatprep.subr.mxu0 0.0
  %238 = vmatpush1.msra.mxu0 %v82
  %239 = vmatprep.subr.mxu0 0.0
  %240 = vmatpush1.msra.mxu0 %v83
  %241 = vmatprep.subr.mxu0 0.0
  %242 = vmatpush1.msra.mxu0 %v84
  %243 = vmatprep.subr.mxu0 0.0
  %244 = vmatpush1.msra.mxu0 %v85
  %245 = vmatprep.subr.mxu0 0.0
  %246 = vmatpush1.msra.mxu0 %v86
  %247 = vmatprep.subr.mxu0 0.0
  %248 = vmatpush1.msra.mxu0 %v87
  %249 = vmatprep.mubr.f32.mxu0 %v17
  %250 = vmatmul.mubr.f32.gmra.mrb[0].mxu0 %v16
  %v251 = vpop.f32.mrb[0].mxu0
  %v252 = vadd.f32 %v177, %v251
  %v253 = vpop.f32.mrb[0].mxu0
  %254 = vmatprep.mubr.f32.mxu0 %v22
  %255 = vmatmul.mubr.f32.gmra.mrb[0].mxu0 %v21
  %v256 = vpop.f32.mrb[0].mxu0
  %v257 = vadd.f32 %v182, %v256
  %v258 = vpop.f32.mrb[0].mxu0
  %259 = vdwg.mxu0
  %260 = vmatprep.subr.mxu0 0.0
  %261 = vmatpush1.msra.mxu0 %v88
  %262 = vmatprep.subr.mxu0 0.0
  %263 = vmatpush1.msra.mxu0 %v89
  %264 = vmatprep.subr.mxu0 0.0
  %265 = vmatpush1.msra.mxu0 %v90
  %266 = vmatprep.subr.mxu0 0.0
  %267 = vmatpush1.msra.mxu0 %v91
  %268 = vmatprep.subr.mxu0 0.0
  %269 = vmatpush1.msra.mxu0 %v92
  %270 = vmatprep.subr.mxu0 0.0
  %271 = vmatpush1.msra.mxu0 %v93
  %272 = vmatprep.subr.mxu0 0.0
  %273 = vmatpush1.msra.mxu0 %v94
  %274 = vmatprep.subr.mxu0 0.0
  %275 = vmatpush1.msra.mxu0 %v95
  %276 = vmatprep.subr.mxu0 0.0
  %277 = vmatpush1.msra.mxu0 0.0
  %278 = vmatprep.subr.mxu0 0.0
  %279 = vmatpush1.msra.mxu0 0.0
  %280 = vmatprep.subr.mxu0 0.0
  %281 = vmatpush1.msra.mxu0 0.0
  %282 = vmatprep.subr.mxu0 0.0
  %283 = vmatpush1.msra.mxu0 0.0
  %284 = vmatprep.subr.mxu0 0.0
  %285 = vmatpush1.msra.mxu0 0.0
  %286 = vmatprep.subr.mxu0 0.0
  %287 = vmatpush1.msra.mxu0 0.0
  %288 = vmatprep.subr.mxu0 0.0
  %289 = vmatpush1.msra.mxu0 0.0
  %290 = vmatprep.subr.mxu0 0.0
  %291 = vmatpush1.msra.mxu0 0.0
  %292 = vmatprep.subr.mxu0 0.0
  %293 = vmatpush1.msra.mxu0 0.0
  %294 = vmatprep.subr.mxu0 0.0
  %295 = vmatpush1.msra.mxu0 0.0
  %296 = vmatprep.subr.mxu0 0.0
  %297 = vmatpush1.msra.mxu0 0.0
  %298 = vmatprep.subr.mxu0 0.0
  %299 = vmatpush1.msra.mxu0 0.0
  %300 = vmatprep.subr.mxu0 0.0
  %301 = vmatpush1.msra.mxu0 0.0
  %302 = vmatprep.subr.mxu0 0.0
  %303 = vmatpush1.msra.mxu0 0.0
  %304 = vmatprep.subr.mxu0 0.0
  %305 = vmatpush1.msra.mxu0 0.0
  %306 = vmatprep.subr.mxu0 0.0
  %307 = vmatpush1.msra.mxu0 0.0
  %308 = vmatprep.subr.mxu0 0.0
  %309 = vmatpush1.msra.mxu0 0.0
  %310 = vmatprep.subr.mxu0 0.0
  %311 = vmatpush1.msra.mxu0 0.0
  %312 = vmatprep.subr.mxu0 0.0
  %313 = vmatpush1.msra.mxu0 0.0
  %314 = vmatprep.subr.mxu0 0.0
  %315 = vmatpush1.msra.mxu0 0.0
  %316 = vmatprep.subr.mxu0 0.0
  %317 = vmatpush1.msra.mxu0 0.0
  %318 = vmatprep.subr.mxu0 0.0
  %319 = vmatpush1.msra.mxu0 0.0
  %320 = vmatprep.subr.mxu0 0.0
  %321 = vmatpush1.msra.mxu0 0.0
  %322 = vmatprep.subr.mxu0 0.0
  %323 = vmatpush1.msra.mxu0 0.0
  %324 = vmatprep.mubr.f32.mxu0 0.0
  %325 = vmatmul.mubr.f32.gmra.mrb[0].mxu0 %v105
  %v326 = vpop.f32.mrb[0].mxu0
  %v327 = vadd.f32 %v252, %v326
  %v328 = vpop.f32.mrb[0].mxu0
  %329 = vmatprep.mubr.f32.mxu0 0.0
  %330 = vmatmul.mubr.f32.gmra.mrb[0].mxu0 %v108
  %v331 = vpop.f32.mrb[0].mxu0
  %v332 = vadd.f32 %v257, %v331
  %v333 = vpop.f32.mrb[0].mxu0
  %334 = vdwg.mxu0
  %v335 = vmax.f32 %v327, 0.0
  %v336 = vmax.f32 %v332, 0.0
  %337 = vst [vmem:[%s3] sm:$0xff] %v335
  %338 = vst [vmem:[%s3 + $0x8] sm:$0xff] %v336
  // Predicated region
  $region14: #{encoder_ref.6} parent=0 // pred_check
    _
  $region15: #{encoder_ref.6} parent=0 // pred_check_branch
    %340 = sbr.rel (0) target = $region17
  $region16: #{encoder_ref.6} parent=0 // pred_region
    _
  $region17: #{encoder_ref.6} parent=0 // pred_fallthru
    _
  // Predicated region
  $region18: #{encoder_ref.6} parent=0 // pred_check
    _
  $region19: #{encoder_ref.6} parent=0 // pred_check_branch
    %342 = sbr.rel (0) target = $region21
  $region20: #{encoder_ref.6} parent=0 // pred_region
    _
  $region21: #{encoder_ref.6} parent=0 // pred_fallthru
    _

// kernel: encoder_ref.7
$region0: #{encoder_ref.7}
  #allocation0 [shape = 'u32[]', space=smem, size = 0x4, offset = 0x4, fixed_abs, tag = 'smem constant byte address 0x4 - core index']
  #allocation1 [shape = 'u32[144,128]{1,0:T(1,128)}', space=vmem, size = 0x12000, scoped, tag = 'internal scratch']
  %s0 = inlined_call_operand.vmem [shape: f32[4,512], index: 0, kind: input, shape index: {}]
  %s1 = inlined_call_operand.vmem [shape: f32[512,256], index: 1, kind: input, shape index: {}]
  %s2 = inlined_call_operand.vmem [shape: f32[1,256], index: 2, kind: input, shape index: {}]
  %s3 = inlined_call_operand.vmem [shape: f32[4,256], index: 3, kind: output, shape index: {}]
  %s4 = sld [smem:[#allocation0]]
  $region22: #{encoder_ref.7} parent=0
    _
  %s6 = ssub.s32 1, %s4
  %s7 = scalar_select 0, %s6, %s4
  // Predicated region
  $region2: #{encoder_ref.7} parent=0 // pred_check
    _
  $region3: #{encoder_ref.7} parent=0 // pred_check_branch
    %9 = sbr.rel (0) target = $region5
  $region4: #{encoder_ref.7} parent=0 // pred_region
    _
  $region5: #{encoder_ref.7} parent=0 // pred_fallthru
    _
  // Predicated region
  $region6: #{encoder_ref.7} parent=0 // pred_check
    _
  $region7: #{encoder_ref.7} parent=0 // pred_check_branch
    %11 = sbr.rel (0) target = $region9
  $region8: #{encoder_ref.7} parent=0 // pred_region
    _
  $region9: #{encoder_ref.7} parent=0 // pred_fallthru
    _
  // Predicated region
  $region10: #{encoder_ref.7} parent=0 // pred_check
    _
  $region11: #{encoder_ref.7} parent=0 // pred_check_branch
    %13 = sbr.rel (0) target = $region13
  $region12: #{encoder_ref.7} parent=0 // pred_region
    _
  $region13: #{encoder_ref.7} parent=0 // pred_fallthru
    _
  %v14 = vld [vmem:[%s0] sm:$0xff]
  %v15 = vld [vmem:[%s0 + $0x8] sm:$0xff]
  %v16 = vld [vmem:[%s1] sm:$0xff]
  %v17 = vld [vmem:[%s1 + $0x8] sm:$0xff]
  %v18 = vld [vmem:[%s1 + $0x10] sm:$0xff]
  %v19 = vld [vmem:[%s1 + $0x18] sm:$0xff]
  %v20 = vld [vmem:[%s1 + $0x20] sm:$0xff]
  %v21 = vld [vmem:[%s1 + $0x28] sm:$0xff]
  %v22 = vld [vmem:[%s1 + $0x30] sm:$0xff]
  %v23 = vld [vmem:[%s1 + $0x38] sm:$0xff]
  %v24 = vld [vmem:[%s1 + $0x40] sm:$0xff]
  %v25 = vld [vmem:[%s1 + $0x48] sm:$0xff]
  %v26 = vld [vmem:[%s1 + $0x50] sm:$0xff]
  %v27 = vld [vmem:[%s1 + $0x58] sm:$0xff]
  %v28 = vld [vmem:[%s1 + $0x60] sm:$0xff]
  %v29 = vld [vmem:[%s1 + $0x68] sm:$0xff]
  %v30 = vld [vmem:[%s1 + $0x70] sm:$0xff]
  %v31 = vld [vmem:[%s1 + $0x78] sm:$0xff]
  %v32 = vld [vmem:[%s1 + $0x80] sm:$0xff]
  %v33 = vld [vmem:[%s1 + $0x88] sm:$0xff]
  %v34 = vld [vmem:[%s1 + $0x90] sm:$0xff]
  %v35 = vld [vmem:[%s1 + $0x98] sm:$0xff]
  %v36 = vld [vmem:[%s1 + $0xa0] sm:$0xff]
  %v37 = vld [vmem:[%s1 + $0xa8] sm:$0xff]
  %v38 = vld [vmem:[%s1 + $0xb0] sm:$0xff]
  %v39 = vld [vmem:[%s1 + $0xb8] sm:$0xff]
  %v40 = vld [vmem:[%s1 + $0xc0] sm:$0xff]
  %v41 = vld [vmem:[%s1 + $0xc8] sm:$0xff]
  %v42 = vld [vmem:[%s1 + $0xd0] sm:$0xff]
  %v43 = vld [vmem:[%s1 + $0xd8] sm:$0xff]
  %v44 = vld [vmem:[%s1 + $0xe0] sm:$0xff]
  %v45 = vld [vmem:[%s1 + $0xe8] sm:$0xff]
  %v46 = vld [vmem:[%s1 + $0xf0] sm:$0xff]
  %v47 = vld [vmem:[%s1 + $0xf8] sm:$0xff]
  %v48 = vld [vmem:[%s1 + $0x100] sm:$0xff]
  %v49 = vld [vmem:[%s1 + $0x108] sm:$0xff]
  %v50 = vld [vmem:[%s1 + $0x110] sm:$0xff]
  %v51 = vld [vmem:[%s1 + $0x118] sm:$0xff]
  %v52 = vld [vmem:[%s1 + $0x120] sm:$0xff]
  %v53 = vld [vmem:[%s1 + $0x128] sm:$0xff]
  %v54 = vld [vmem:[%s1 + $0x130] sm:$0xff]
  %v55 = vld [vmem:[%s1 + $0x138] sm:$0xff]
  %v56 = vld [vmem:[%s1 + $0x140] sm:$0xff]
  %v57 = vld [vmem:[%s1 + $0x148] sm:$0xff]
  %v58 = vld [vmem:[%s1 + $0x150] sm:$0xff]
  %v59 = vld [vmem:[%s1 + $0x158] sm:$0xff]
  %v60 = vld [vmem:[%s1 + $0x160] sm:$0xff]
  %v61 = vld [vmem:[%s1 + $0x168] sm:$0xff]
  %v62 = vld [vmem:[%s1 + $0x170] sm:$0xff]
  %v63 = vld [vmem:[%s1 + $0x178] sm:$0xff]
  %v64 = vld [vmem:[%s1 + $0x180] sm:$0xff]
  %v65 = vld [vmem:[%s1 + $0x188] sm:$0xff]
  %v66 = vld [vmem:[%s1 + $0x190] sm:$0xff]
  %v67 = vld [vmem:[%s1 + $0x198] sm:$0xff]
  %v68 = vld [vmem:[%s1 + $0x1a0] sm:$0xff]
  %v69 = vld [vmem:[%s1 + $0x1a8] sm:$0xff]
  %v70 = vld [vmem:[%s1 + $0x1b0] sm:$0xff]
  %v71 = vld [vmem:[%s1 + $0x1b8] sm:$0xff]
  %v72 = vld [vmem:[%s1 + $0x1c0] sm:$0xff]
  %v73 = vld [vmem:[%s1 + $0x1c8] sm:$0xff]
  %v74 = vld [vmem:[%s1 + $0x1d0] sm:$0xff]
  %v75 = vld [vmem:[%s1 + $0x1d8] sm:$0xff]
  %v76 = vld [vmem:[%s1 + $0x1e0] sm:$0xff]
  %v77 = vld [vmem:[%s1 + $0x1e8] sm:$0xff]
  %v78 = vld [vmem:[%s1 + $0x1f0] sm:$0xff]
  %v79 = vld [vmem:[%s1 + $0x1f8] sm:$0xff]
  %v80 = vld [vmem:[%s1 + $0x200] sm:$0xff]
  %v81 = vld [vmem:[%s1 + $0x208] sm:$0xff]
  %v82 = vld [vmem:[%s1 + $0x210] sm:$0xff]
  %v83 = vld [vmem:[%s1 + $0x218] sm:$0xff]
  %v84 = vld [vmem:[%s1 + $0x220] sm:$0xff]
  %v85 = vld [vmem:[%s1 + $0x228] sm:$0xff]
  %v86 = vld [vmem:[%s1 + $0x230] sm:$0xff]
  %v87 = vld [vmem:[%s1 + $0x238] sm:$0xff]
  %v88 = vld [vmem:[%s1 + $0x240] sm:$0xff]
  %v89 = vld [vmem:[%s1 + $0x248] sm:$0xff]
  %v90 = vld [vmem:[%s1 + $0x250] sm:$0xff]
  %v91 = vld [vmem:[%s1 + $0x258] sm:$0xff]
  %v92 = vld [vmem:[%s1 + $0x260] sm:$0xff]
  %v93 = vld [vmem:[%s1 + $0x268] sm:$0xff]
  %v94 = vld [vmem:[%s1 + $0x270] sm:$0xff]
  %v95 = vld [vmem:[%s1 + $0x278] sm:$0xff]
  %v96 = vld [vmem:[%s1 + $0x280] sm:$0xff]
  %v97 = vld [vmem:[%s1 + $0x288] sm:$0xff]
  %v98 = vld [vmem:[%s1 + $0x290] sm:$0xff]
  %v99 = vld [vmem:[%s1 + $0x298] sm:$0xff]
  %v100 = vld [vmem:[%s1 + $0x2a0] sm:$0xff]
  %v101 = vld [vmem:[%s1 + $0x2a8] sm:$0xff]
  %v102 = vld [vmem:[%s1 + $0x2b0] sm:$0xff]
  %v103 = vld [vmem:[%s1 + $0x2b8] sm:$0xff]
  %v104 = vld [vmem:[%s1 + $0x2c0] sm:$0xff]
  %v105 = vld [vmem:[%s1 + $0x2c8] sm:$0xff]
  %v106 = vld [vmem:[%s1 + $0x2d0] sm:$0xff]
  %v107 = vld [vmem:[%s1 + $0x2d8] sm:$0xff]
  %v108 = vld [vmem:[%s1 + $0x2e0] sm:$0xff]
  %v109 = vld [vmem:[%s1 + $0x2e8] sm:$0xff]
  %v110 = vld [vmem:[%s1 + $0x2f0] sm:$0xff]
  %v111 = vld [vmem:[%s1 + $0x2f8] sm:$0xff]
  %v112 = vld [vmem:[%s1 + $0x300] sm:$0xff]
  %v113 = vld [vmem:[%s1 + $0x308] sm:$0xff]
  %v114 = vld [vmem:[%s1 + $0x310] sm:$0xff]
  %v115 = vld [vmem:[%s1 + $0x318] sm:$0xff]
  %v116 = vld [vmem:[%s1 + $0x320] sm:$0xff]
  %v117 = vld [vmem:[%s1 + $0x328] sm:$0xff]
  %v118 = vld [vmem:[%s1 + $0x330] sm:$0xff]
  %v119 = vld [vmem:[%s1 + $0x338] sm:$0xff]
  %v120 = vld [vmem:[%s1 + $0x340] sm:$0xff]
  %v121 = vld [vmem:[%s1 + $0x348] sm:$0xff]
  %v122 = vld [vmem:[%s1 + $0x350] sm:$0xff]
  %v123 = vld [vmem:[%s1 + $0x358] sm:$0xff]
  %v124 = vld [vmem:[%s1 + $0x360] sm:$0xff]
  %v125 = vld [vmem:[%s1 + $0x368] sm:$0xff]
  %v126 = vld [vmem:[%s1 + $0x370] sm:$0xff]
  %v127 = vld [vmem:[%s1 + $0x378] sm:$0xff]
  %v128 = vld [vmem:[%s1 + $0x380] sm:$0xff]
  %v129 = vld [vmem:[%s1 + $0x388] sm:$0xff]
  %v130 = vld [vmem:[%s1 + $0x390] sm:$0xff]
  %v131 = vld [vmem:[%s1 + $0x398] sm:$0xff]
  %v132 = vld [vmem:[%s1 + $0x3a0] sm:$0xff]
  %v133 = vld [vmem:[%s1 + $0x3a8] sm:$0xff]
  %v134 = vld [vmem:[%s1 + $0x3b0] sm:$0xff]
  %v135 = vld [vmem:[%s1 + $0x3b8] sm:$0xff]
  %v136 = vld [vmem:[%s1 + $0x3c0] sm:$0xff]
  %v137 = vld [vmem:[%s1 + $0x3c8] sm:$0xff]
  %v138 = vld [vmem:[%s1 + $0x3d0] sm:$0xff]
  %v139 = vld [vmem:[%s1 + $0x3d8] sm:$0xff]
  %v140 = vld [vmem:[%s1 + $0x3e0] sm:$0xff]
  %v141 = vld [vmem:[%s1 + $0x3e8] sm:$0xff]
  %v142 = vld [vmem:[%s1 + $0x3f0] sm:$0xff]
  %v143 = vld [vmem:[%s1 + $0x3f8] sm:$0xff]
  %v144 = vld [vmem:[%s2] sm:$0x3]
  %v146 = vlaneseq
  %v147 = vshrl.u32 %v146, 7
  %v148 = vsub.s32 0, %v147
  %v149 = vrot.slane %v144, %v148
  %v150 = vlaneseq
  %v151 = vshrl.u32 %v150, 7
  %v152 = vsub.s32 1, %v151
  %v153 = vrot.slane %v144, %v152
  %v158 = vcombine.high %v14, %v14
  %v159 = vcombine.high %v15, %v15
  %162 = vmatprep.subr.mxu0 %v17
  %163 = vmatpush1.msra.mxu0 %v16
  %164 = vmatprep.subr.mxu0 %v19
  %165 = vmatpush1.msra.mxu0 %v18
  %166 = vmatprep.subr.mxu0 %v21
  %167 = vmatpush1.msra.mxu0 %v20
  %168 = vmatprep.subr.mxu0 %v23
  %169 = vmatpush1.msra.mxu0 %v22
  %170 = vmatprep.subr.mxu0 %v25
  %171 = vmatpush1.msra.mxu0 %v24
  %172 = vmatprep.subr.mxu0 %v27
  %173 = vmatpush1.msra.mxu0 %v26
  %174 = vmatprep.subr.mxu0 %v29
  %175 = vmatpush1.msra.mxu0 %v28
  %176 = vmatprep.subr.mxu0 %v31
  %177 = vmatpush1.msra.mxu0 %v30
  %178 = vmatprep.subr.mxu0 %v33
  %179 = vmatpush1.msra.mxu0 %v32
  %180 = vmatprep.subr.mxu0 %v35
  %181 = vmatpush1.msra.mxu0 %v34
  %182 = vmatprep.subr.mxu0 %v37
  %183 = vmatpush1.msra.mxu0 %v36
  %184 = vmatprep.subr.mxu0 %v39
  %185 = vmatpush1.msra.mxu0 %v38
  %186 = vmatprep.subr.mxu0 %v41
  %187 = vmatpush1.msra.mxu0 %v40
  %188 = vmatprep.subr.mxu0 %v43
  %189 = vmatpush1.msra.mxu0 %v42
  %190 = vmatprep.subr.mxu0 %v45
  %191 = vmatpush1.msra.mxu0 %v44
  %192 = vmatprep.subr.mxu0 %v47
  %193 = vmatpush1.msra.mxu0 %v46
  %194 = vmatprep.subr.mxu0 %v49
  %195 = vmatpush1.msra.mxu0 %v48
  %196 = vmatprep.subr.mxu0 %v51
  %197 = vmatpush1.msra.mxu0 %v50
  %198 = vmatprep.subr.mxu0 %v53
  %199 = vmatpush1.msra.mxu0 %v52
  %200 = vmatprep.subr.mxu0 %v55
  %201 = vmatpush1.msra.mxu0 %v54
  %202 = vmatprep.subr.mxu0 %v57
  %203 = vmatpush1.msra.mxu0 %v56
  %204 = vmatprep.subr.mxu0 %v59
  %205 = vmatpush1.msra.mxu0 %v58
  %206 = vmatprep.subr.mxu0 %v61
  %207 = vmatpush1.msra.mxu0 %v60
  %208 = vmatprep.subr.mxu0 %v63
  %209 = vmatpush1.msra.mxu0 %v62
  %210 = vmatprep.subr.mxu0 %v65
  %211 = vmatpush1.msra.mxu0 %v64
  %212 = vmatprep.subr.mxu0 %v67
  %213 = vmatpush1.msra.mxu0 %v66
  %214 = vmatprep.subr.mxu0 %v69
  %215 = vmatpush1.msra.mxu0 %v68
  %216 = vmatprep.subr.mxu0 %v71
  %217 = vmatpush1.msra.mxu0 %v70
  %218 = vmatprep.subr.mxu0 %v73
  %219 = vmatpush1.msra.mxu0 %v72
  %220 = vmatprep.subr.mxu0 %v75
  %221 = vmatpush1.msra.mxu0 %v74
  %222 = vmatprep.subr.mxu0 %v77
  %223 = vmatpush1.msra.mxu0 %v76
  %224 = vmatprep.subr.mxu0 %v79
  %225 = vmatpush1.msra.mxu0 %v78
  %226 = vmatprep.mubr.f32.mxu0 %v158
  %227 = vmatmul.mubr.f32.gmra.mrb[0].mxu0 %v14
  %v228 = vpop.f32.mrb[0].mxu0
  %v229 = vadd.f32 %v149, %v228
  %v230 = vpop.f32.mrb[0].mxu0
  %v231 = vadd.f32 %v153, %v230
  %232 = vdwg.mxu0
  %233 = vmatprep.subr.mxu0 %v81
  %234 = vmatpush1.msra.mxu0 %v80
  %235 = vmatprep.subr.mxu0 %v83
  %236 = vmatpush1.msra.mxu0 %v82
  %237 = vmatprep.subr.mxu0 %v85
  %238 = vmatpush1.msra.mxu0 %v84
  %239 = vmatprep.subr.mxu0 %v87
  %240 = vmatpush1.msra.mxu0 %v86
  %241 = vmatprep.subr.mxu0 %v89
  %242 = vmatpush1.msra.mxu0 %v88
  %243 = vmatprep.subr.mxu0 %v91
  %244 = vmatpush1.msra.mxu0 %v90
  %245 = vmatprep.subr.mxu0 %v93
  %246 = vmatpush1.msra.mxu0 %v92
  %247 = vmatprep.subr.mxu0 %v95
  %248 = vmatpush1.msra.mxu0 %v94
  %249 = vmatprep.subr.mxu0 %v97
  %250 = vmatpush1.msra.mxu0 %v96
  %251 = vmatprep.subr.mxu0 %v99
  %252 = vmatpush1.msra.mxu0 %v98
  %253 = vmatprep.subr.mxu0 %v101
  %254 = vmatpush1.msra.mxu0 %v100
  %255 = vmatprep.subr.mxu0 %v103
  %256 = vmatpush1.msra.mxu0 %v102
  %257 = vmatprep.subr.mxu0 %v105
  %258 = vmatpush1.msra.mxu0 %v104
  %259 = vmatprep.subr.mxu0 %v107
  %260 = vmatpush1.msra.mxu0 %v106
  %261 = vmatprep.subr.mxu0 %v109
  %262 = vmatpush1.msra.mxu0 %v108
  %263 = vmatprep.subr.mxu0 %v111
  %264 = vmatpush1.msra.mxu0 %v110
  %265 = vmatprep.subr.mxu0 %v113
  %266 = vmatpush1.msra.mxu0 %v112
  %267 = vmatprep.subr.mxu0 %v115
  %268 = vmatpush1.msra.mxu0 %v114
  %269 = vmatprep.subr.mxu0 %v117
  %270 = vmatpush1.msra.mxu0 %v116
  %271 = vmatprep.subr.mxu0 %v119
  %272 = vmatpush1.msra.mxu0 %v118
  %273 = vmatprep.subr.mxu0 %v121
  %274 = vmatpush1.msra.mxu0 %v120
  %275 = vmatprep.subr.mxu0 %v123
  %276 = vmatpush1.msra.mxu0 %v122
  %277 = vmatprep.subr.mxu0 %v125
  %278 = vmatpush1.msra.mxu0 %v124
  %279 = vmatprep.subr.mxu0 %v127
  %280 = vmatpush1.msra.mxu0 %v126
  %281 = vmatprep.subr.mxu0 %v129
  %282 = vmatpush1.msra.mxu0 %v128
  %283 = vmatprep.subr.mxu0 %v131
  %284 = vmatpush1.msra.mxu0 %v130
  %285 = vmatprep.subr.mxu0 %v133
  %286 = vmatpush1.msra.mxu0 %v132
  %287 = vmatprep.subr.mxu0 %v135
  %288 = vmatpush1.msra.mxu0 %v134
  %289 = vmatprep.subr.mxu0 %v137
  %290 = vmatpush1.msra.mxu0 %v136
  %291 = vmatprep.subr.mxu0 %v139
  %292 = vmatpush1.msra.mxu0 %v138
  %293 = vmatprep.subr.mxu0 %v141
  %294 = vmatpush1.msra.mxu0 %v140
  %295 = vmatprep.subr.mxu0 %v143
  %296 = vmatpush1.msra.mxu0 %v142
  %297 = vmatprep.mubr.f32.mxu0 %v159
  %298 = vmatmul.mubr.f32.gmra.mrb[0].mxu0 %v15
  %v299 = vpop.f32.mrb[0].mxu0
  %v300 = vadd.f32 %v229, %v299
  %v301 = vpop.f32.mrb[0].mxu0
  %v302 = vadd.f32 %v231, %v301
  %303 = vdwg.mxu0
  %v304 = vmax.f32 %v300, 0.0
  %v305 = vmax.f32 %v302, 0.0
  %v308 = vcombine.low %v304, %v305
  %310 = vst [vmem:[%s3] sm:$0xff] %v308
  // Predicated region
  $region14: #{encoder_ref.7} parent=0 // pred_check
    _
  $region15: #{encoder_ref.7} parent=0 // pred_check_branch
    %312 = sbr.rel (0) target = $region17
  $region16: #{encoder_ref.7} parent=0 // pred_region
    _
  $region17: #{encoder_ref.7} parent=0 // pred_fallthru
    _
  // Predicated region
  $region18: #{encoder_ref.7} parent=0 // pred_check
    _
  $region19: #{encoder_ref.7} parent=0 // pred_check_branch
    %314 = sbr.rel (0) target = $region21
  $region20: #{encoder_ref.7} parent=0 // pred_region
    _
  $region21: #{encoder_ref.7} parent=0 // pred_fallthru
    _

</llo_original>
